<compile_context>
chip_gen: v5e
topology: v5e:2x2
jax: 0.10.0
libtpu: 0.0.40
codegen_flags: <defaults>
</compile_context>

<pallas_src>
import functools

import jax
import jax.numpy as jnp
from jax.experimental import pallas as pl
from jax.experimental.pallas import tpu as pltpu


# ----------------------------- Pallas kernel ------------------------------


def _lstm_kernel(x_ref, w_ih_ref, w_hh_ref, b_ref, len_ref, h_out_ref,
                 gx_scr, *, T, B, H):
    """Whole-sequence LSTM in a single (gridless) invocation.

    x_ref    : (T*B, D)   bf16  time-major flattened inputs
    w_ih_ref : (D, 4H)    bf16  input->gates weights, columns (i,f,o,g)
    w_hh_ref : (H, 4H)    bf16  hidden->gates weights, columns (i,f,o,g)
    b_ref    : (1, 4H)    f32   b_ih + b_hh, columns (i,f,o,g)
    len_ref  : (B, 1)     int32 sequence lengths
    h_out_ref: (B, H)     final hidden state (h[0])
    gx_scr   : (T*B, 4H)  f32   scratch holding the hoisted input projection
    """
    # ---- time-independent input projection: one big bf16 MXU call (M=T*B) --
    gx_scr[...] = (
        jnp.dot(x_ref[...], w_ih_ref[...], preferred_element_type=jnp.float32)
        + b_ref[...])

    # ---- sequence-length mask for all steps, computed once ----
    keep_all = len_ref[...] > jax.lax.broadcasted_iota(jnp.int32, (B, T), 1)

    h = jnp.zeros((B, H), jnp.float32)
    c = jnp.zeros((B, H), jnp.float32)

    # ---- serial recurrence, statically unrolled (T is small) ----
    for t in range(T):
        # only h @ W_hh^T remains on the serial critical path; bf16 operands,
        # f32 accumulation; W_hh streamed from VMEM (not held live in vregs).
        gates = gx_scr[pl.ds(t * B, B), :] + jnp.dot(
            h.astype(jnp.bfloat16), w_hh_ref[...],
            preferred_element_type=jnp.float32)

        # columns are (i, f, o, g): one wide sigmoid, one tanh per step
        sig = jax.nn.sigmoid(gates[:, :3 * H])
        i_g = sig[:, :H]
        f_g = sig[:, H:2 * H]
        o_g = sig[:, 2 * H:]
        g_g = jnp.tanh(gates[:, 3 * H:])

        c_new = f_g * c + i_g * g_g
        h_new = o_g * jnp.tanh(c_new)

        # pack_padded_sequence semantics: freeze state once t >= seq_len[b]
        keep = keep_all[:, t:t + 1]                 # (B, 1), broadcasts over H
        h = jnp.where(keep, h_new, h)
        c = jnp.where(keep, c_new, c)

    h_out_ref[...] = h.astype(h_out_ref.dtype)


def lstm_last_hidden(feats, seq_lengths, w_ih, w_hh, b_ih, b_hh):
    """feats: (B, T, D) f32; seq_lengths: (B,) int32.
       w_ih: (4H, D), w_hh: (4H, H), b_ih/b_hh: (4H,)  (PyTorch layout).
       Returns h[0]: (B, H)."""
    B, T, D = feats.shape
    H = w_hh.shape[1]

    def to_ifog(m):
        """Reorder last axis from PyTorch (i,f,g,o) to (i,f,o,g)."""
        return jnp.concatenate(
            [m[..., :2 * H], m[..., 3 * H:], m[..., 2 * H:3 * H]], axis=-1)

    # time-major, flattened so the input projection is one (T*B, D) matmul
    x_flat = (jnp.transpose(feats, (1, 0, 2))
              .reshape(T * B, D).astype(jnp.bfloat16))
    w_ih_t = to_ifog(jnp.transpose(w_ih)).astype(jnp.bfloat16)   # (D, 4H)
    w_hh_t = to_ifog(jnp.transpose(w_hh)).astype(jnp.bfloat16)   # (H, 4H)
    bias = to_ifog((b_ih + b_hh).reshape(1, 4 * H))               # f32
    lens = seq_lengths.astype(jnp.int32).reshape(B, 1)

    kernel = functools.partial(_lstm_kernel, T=T, B=B, H=H)
    vmem_spec = pl.BlockSpec(memory_space=pltpu.MemorySpace.VMEM)

    return pl.pallas_call(
        kernel,
        out_shape=jax.ShapeDtypeStruct((B, H), feats.dtype),
        in_specs=[vmem_spec] * 5,
        out_specs=vmem_spec,
        scratch_shapes=[
            # hoisted gates_x; first buffer to grow if T/B/H are scaled up
            pltpu.VMEM((T * B, 4 * H), jnp.float32),
        ],
    )(x_flat, w_ih_t, w_hh_t, bias, lens)


# ----------------------- deterministic parameter init ---------------------


def _orthogonal(key, shape):
    """Deterministic orthogonal init (matches init.orthogonal_ semantics)."""
    rows, cols = shape
    n, m = max(rows, cols), min(rows, cols)
    a = jax.random.normal(key, (n, m), dtype=jnp.float32)
    q, r = jnp.linalg.qr(a)
    q = q * jnp.sign(jnp.diagonal(r))                # sign correction
    if rows < cols:
        q = q.T
    return q[:rows, :cols]


def make_params(key, input_dim, hidden):
    k1, k2, k3, k4 = jax.random.split(key, 4)
    w_ih = _orthogonal(k1, (4 * hidden, input_dim))
    w_hh = _orthogonal(k2, (4 * hidden, hidden))
    bound = 1.0 / jnp.sqrt(hidden)
    b_ih = jax.random.uniform(k3, (4 * hidden,), minval=-bound, maxval=bound,
                              dtype=jnp.float32)
    b_hh = jax.random.uniform(k4, (4 * hidden,), minval=-bound, maxval=bound,
                              dtype=jnp.float32)
    return w_ih, w_hh, b_ih, b_hh


# ------------------------------ JAX reference ------------------------------


def lstm_last_hidden_ref(feats, seq_lengths, w_ih, w_hh, b_ih, b_hh):
    B, T, D = feats.shape
    H = w_hh.shape[1]
    h = jnp.zeros((B, H), jnp.float32)
    c = jnp.zeros((B, H), jnp.float32)

    def step(carry, inp):
        h, c = carry
        x_t, t = inp
        gates = x_t @ w_ih.T + h @ w_hh.T + b_ih + b_hh
        i_g, f_g, g_g, o_g = jnp.split(gates, 4, axis=-1)
        i_g = jax.nn.sigmoid(i_g)
        f_g = jax.nn.sigmoid(f_g)
        g_g = jnp.tanh(g_g)
        o_g = jax.nn.sigmoid(o_g)
        c_new = f_g * c + i_g * g_g
        h_new = o_g * jnp.tanh(c_new)
        m = (t < seq_lengths)[:, None].astype(jnp.float32)
        return (m * h_new + (1 - m) * h, m * c_new + (1 - m) * c), None

    (h, _), _ = jax.lax.scan(
        step, (h, c), (jnp.transpose(feats, (1, 0, 2)), jnp.arange(T)))
    return h


# ----------------------------------- main ----------------------------------

if __name__ == "__main__":
    # config: embed_dim=96, mask_dim=32 -> input 128; l_hidden_size=128;
    #         l_num_layers=2 -> num_layers=1; dropout irrelevant (1 layer).
    B, T = 8, 8
    EMBED_DIM, MASK_DIM, HIDDEN = 96, 32, 128
    D = EMBED_DIM + MASK_DIM

    key = jax.random.PRNGKey(0)
    k_x, k_p = jax.random.split(key)

    feats = jax.random.normal(k_x, (B, T, D), dtype=jnp.float32)
    # pack_padded_sequence expects lengths sorted in decreasing order
    seq_lengths = jnp.array([8, 8, 7, 6, 5, 4, 3, 2], dtype=jnp.int32)

    w_ih, w_hh, b_ih, b_hh = make_params(k_p, D, HIDDEN)

    h_kernel = lstm_last_hidden(feats, seq_lengths, w_ih, w_hh, b_ih, b_hh)
    jax.block_until_ready(h_kernel)

    h_ref = lstm_last_hidden_ref(feats, seq_lengths, w_ih, w_hh, b_ih, b_hh)
    assert h_kernel.shape == (B, HIDDEN)
    # tolerance loosened vs the f32 reference because matmul operands are bf16
    max_err = float(jnp.max(jnp.abs(h_kernel - h_ref)))
    assert jnp.allclose(h_kernel, h_ref, atol=5e-2, rtol=5e-2), max_err

    print("KERNEL_OK")
</pallas_src>

<mosaic_0001>
module attributes {stable_mosaic.version = 11 : i64} {
  func.func @_lstm_kernel(%arg0: memref<64x128xbf16, #tpu.memory_space<vmem>>, %arg1: memref<128x512xbf16, #tpu.memory_space<vmem>>, %arg2: memref<128x512xbf16, #tpu.memory_space<vmem>>, %arg3: memref<1x512xf32, #tpu.memory_space<vmem>>, %arg4: memref<8x1xi32, #tpu.memory_space<vmem>>, %arg5: memref<8x128xf32, #tpu.memory_space<vmem>>, %arg6: memref<64x512xf32, #tpu.memory_space<vmem>>) attributes {dimension_semantics = [], scalar_prefetch = 0 : i64, scratch_operands = 1 : i64, tpu.core_type = #tpu.core_type<tc>} {
    %c0 = arith.constant 0 : index
    %c0_0 = arith.constant 0 : index
    %0 = vector.load %arg0[%c0, %c0_0] : memref<64x128xbf16, #tpu.memory_space<vmem>>, vector<64x128xbf16>
    %c0_1 = arith.constant 0 : index
    %c0_2 = arith.constant 0 : index
    %1 = vector.load %arg1[%c0_1, %c0_2] : memref<128x512xbf16, #tpu.memory_space<vmem>>, vector<128x512xbf16>
    %cst = arith.constant dense<0.000000e+00> : vector<64x512xf32>
    %2 = tpu.matmul %0, %1, %cst {dimension_numbers = #tpu.dot_dimension_numbers<[1], [0], [0], [1], [0, 0, 1, 1], [], []>} : vector<64x128xbf16>, vector<128x512xbf16>, vector<64x512xf32> -> vector<64x512xf32>
    %c0_3 = arith.constant 0 : index
    %c0_4 = arith.constant 0 : index
    %3 = vector.load %arg3[%c0_3, %c0_4] : memref<1x512xf32, #tpu.memory_space<vmem>>, vector<1x512xf32>
    %4 = vector.broadcast %3 : vector<1x512xf32> to vector<64x512xf32>
    %5 = arith.addf %2, %4 : vector<64x512xf32>
    %c0_5 = arith.constant 0 : index
    %c0_6 = arith.constant 0 : index
    %6 = vector.load %arg6[%c0_5, %c0_6] : memref<64x512xf32, #tpu.memory_space<vmem>>, vector<64x512xf32>
    tpu.vector_store %arg6[%c0_5, %c0_6], %5 {strides = array<i32>} : memref<64x512xf32, #tpu.memory_space<vmem>>, vector<64x512xf32>,
    %c0_7 = arith.constant 0 : index
    %c0_8 = arith.constant 0 : index
    %7 = vector.load %arg4[%c0_7, %c0_8] : memref<8x1xi32, #tpu.memory_space<vmem>>, vector<8x1xi32>
    %8 = tpu.iota {dimensions = array<i32: 1>} : vector<8x8xi32>
    %9 = vector.broadcast %7 : vector<8x1xi32> to vector<8x8xi32>
    %10 = arith.cmpi sgt, %9, %8 : vector<8x8xi32>
    %cst_9 = arith.constant 0.000000e+00 : f32
    %11 = vector.broadcast %cst_9 : f32 to vector<8x128xf32>
    %cst_10 = arith.constant 0.000000e+00 : f32
    %12 = vector.broadcast %cst_10 : f32 to vector<8x128xf32>
    %c0_11 = arith.constant 0 : index
    %c0_12 = arith.constant 0 : index
    %13 = vector.load %arg6[%c0_11, %c0_12] : memref<64x512xf32, #tpu.memory_space<vmem>>, vector<8x512xf32>
    %14 = arith.truncf %11 : vector<8x128xf32> to vector<8x128xbf16>
    %c0_13 = arith.constant 0 : index
    %c0_14 = arith.constant 0 : index
    %15 = vector.load %arg2[%c0_13, %c0_14] : memref<128x512xbf16, #tpu.memory_space<vmem>>, vector<128x512xbf16>
    %cst_15 = arith.constant dense<0.000000e+00> : vector<8x512xf32>
    %16 = tpu.matmul %14, %15, %cst_15 {dimension_numbers = #tpu.dot_dimension_numbers<[1], [0], [0], [1], [0, 0, 1, 1], [], []>} : vector<8x128xbf16>, vector<128x512xbf16>, vector<8x512xf32> -> vector<8x512xf32>
    %17 = arith.addf %13, %16 : vector<8x512xf32>
    %18 = vector.extract_strided_slice %17 {offsets = [0, 0], sizes = [8, 384], strides = [1, 1]} : vector<8x512xf32> to vector<8x384xf32>
    %19 = arith.negf %18 : vector<8x384xf32>
    %20 = math.exp %19 : vector<8x384xf32>
    %cst_16 = arith.constant 1.000000e+00 : f32
    %21 = vector.broadcast %cst_16 : f32 to vector<8x384xf32>
    %22 = arith.addf %21, %20 : vector<8x384xf32>
    %23 = arith.divf %21, %22 : vector<8x384xf32>
    %24 = vector.extract_strided_slice %23 {offsets = [0, 0], sizes = [8, 128], strides = [1, 1]} : vector<8x384xf32> to vector<8x128xf32>
    %25 = vector.extract_strided_slice %23 {offsets = [0, 128], sizes = [8, 128], strides = [1, 1]} : vector<8x384xf32> to vector<8x128xf32>
    %26 = vector.extract_strided_slice %23 {offsets = [0, 256], sizes = [8, 128], strides = [1, 1]} : vector<8x384xf32> to vector<8x128xf32>
    %27 = vector.extract_strided_slice %17 {offsets = [0, 384], sizes = [8, 128], strides = [1, 1]} : vector<8x512xf32> to vector<8x128xf32>
    %28 = math.tanh %27 : vector<8x128xf32>
    %29 = arith.mulf %25, %12 : vector<8x128xf32>
    %30 = arith.mulf %24, %28 : vector<8x128xf32>
    %31 = arith.addf %29, %30 : vector<8x128xf32>
    %32 = math.tanh %31 : vector<8x128xf32>
    %33 = arith.mulf %26, %32 : vector<8x128xf32>
    %34 = vector.extract_strided_slice %10 {offsets = [0, 0], sizes = [8, 1], strides = [1, 1]} : vector<8x8xi1> to vector<8x1xi1>
    %35 = vector.shape_cast %34 : vector<8x1xi1> to vector<8x1xi1>
    %36 = vector.broadcast %35 : vector<8x1xi1> to vector<8x128xi1>
    %37 = arith.select %36, %33, %11 : vector<8x128xi1>, vector<8x128xf32>
    %38 = vector.shape_cast %34 : vector<8x1xi1> to vector<8x1xi1>
    %39 = vector.broadcast %38 : vector<8x1xi1> to vector<8x128xi1>
    %40 = arith.select %39, %31, %12 : vector<8x128xi1>, vector<8x128xf32>
    %c8 = arith.constant 8 : index
    %c0_17 = arith.constant 0 : index
    %41 = vector.load %arg6[%c8, %c0_17] : memref<64x512xf32, #tpu.memory_space<vmem>>, vector<8x512xf32>
    %42 = arith.truncf %37 : vector<8x128xf32> to vector<8x128xbf16>
    %c0_18 = arith.constant 0 : index
    %c0_19 = arith.constant 0 : index
    %43 = vector.load %arg2[%c0_18, %c0_19] : memref<128x512xbf16, #tpu.memory_space<vmem>>, vector<128x512xbf16>
    %cst_20 = arith.constant dense<0.000000e+00> : vector<8x512xf32>
    %44 = tpu.matmul %42, %43, %cst_20 {dimension_numbers = #tpu.dot_dimension_numbers<[1], [0], [0], [1], [0, 0, 1, 1], [], []>} : vector<8x128xbf16>, vector<128x512xbf16>, vector<8x512xf32> -> vector<8x512xf32>
    %45 = arith.addf %41, %44 : vector<8x512xf32>
    %46 = vector.extract_strided_slice %45 {offsets = [0, 0], sizes = [8, 384], strides = [1, 1]} : vector<8x512xf32> to vector<8x384xf32>
    %47 = arith.negf %46 : vector<8x384xf32>
    %48 = math.exp %47 : vector<8x384xf32>
    %cst_21 = arith.constant 1.000000e+00 : f32
    %49 = vector.broadcast %cst_21 : f32 to vector<8x384xf32>
    %50 = arith.addf %49, %48 : vector<8x384xf32>
    %51 = arith.divf %49, %50 : vector<8x384xf32>
    %52 = vector.extract_strided_slice %51 {offsets = [0, 0], sizes = [8, 128], strides = [1, 1]} : vector<8x384xf32> to vector<8x128xf32>
    %53 = vector.extract_strided_slice %51 {offsets = [0, 128], sizes = [8, 128], strides = [1, 1]} : vector<8x384xf32> to vector<8x128xf32>
    %54 = vector.extract_strided_slice %51 {offsets = [0, 256], sizes = [8, 128], strides = [1, 1]} : vector<8x384xf32> to vector<8x128xf32>
    %55 = vector.extract_strided_slice %45 {offsets = [0, 384], sizes = [8, 128], strides = [1, 1]} : vector<8x512xf32> to vector<8x128xf32>
    %56 = math.tanh %55 : vector<8x128xf32>
    %57 = arith.mulf %53, %40 : vector<8x128xf32>
    %58 = arith.mulf %52, %56 : vector<8x128xf32>
    %59 = arith.addf %57, %58 : vector<8x128xf32>
    %60 = math.tanh %59 : vector<8x128xf32>
    %61 = arith.mulf %54, %60 : vector<8x128xf32>
    %62 = vector.extract_strided_slice %10 {offsets = [0, 1], sizes = [8, 1], strides = [1, 1]} : vector<8x8xi1> to vector<8x1xi1>
    %63 = vector.shape_cast %62 : vector<8x1xi1> to vector<8x1xi1>
    %64 = vector.broadcast %63 : vector<8x1xi1> to vector<8x128xi1>
    %65 = arith.select %64, %61, %37 : vector<8x128xi1>, vector<8x128xf32>
    %66 = vector.shape_cast %62 : vector<8x1xi1> to vector<8x1xi1>
    %67 = vector.broadcast %66 : vector<8x1xi1> to vector<8x128xi1>
    %68 = arith.select %67, %59, %40 : vector<8x128xi1>, vector<8x128xf32>
    %c16 = arith.constant 16 : index
    %c0_22 = arith.constant 0 : index
    %69 = vector.load %arg6[%c16, %c0_22] : memref<64x512xf32, #tpu.memory_space<vmem>>, vector<8x512xf32>
    %70 = arith.truncf %65 : vector<8x128xf32> to vector<8x128xbf16>
    %c0_23 = arith.constant 0 : index
    %c0_24 = arith.constant 0 : index
    %71 = vector.load %arg2[%c0_23, %c0_24] : memref<128x512xbf16, #tpu.memory_space<vmem>>, vector<128x512xbf16>
    %cst_25 = arith.constant dense<0.000000e+00> : vector<8x512xf32>
    %72 = tpu.matmul %70, %71, %cst_25 {dimension_numbers = #tpu.dot_dimension_numbers<[1], [0], [0], [1], [0, 0, 1, 1], [], []>} : vector<8x128xbf16>, vector<128x512xbf16>, vector<8x512xf32> -> vector<8x512xf32>
    %73 = arith.addf %69, %72 : vector<8x512xf32>
    %74 = vector.extract_strided_slice %73 {offsets = [0, 0], sizes = [8, 384], strides = [1, 1]} : vector<8x512xf32> to vector<8x384xf32>
    %75 = arith.negf %74 : vector<8x384xf32>
    %76 = math.exp %75 : vector<8x384xf32>
    %cst_26 = arith.constant 1.000000e+00 : f32
    %77 = vector.broadcast %cst_26 : f32 to vector<8x384xf32>
    %78 = arith.addf %77, %76 : vector<8x384xf32>
    %79 = arith.divf %77, %78 : vector<8x384xf32>
    %80 = vector.extract_strided_slice %79 {offsets = [0, 0], sizes = [8, 128], strides = [1, 1]} : vector<8x384xf32> to vector<8x128xf32>
    %81 = vector.extract_strided_slice %79 {offsets = [0, 128], sizes = [8, 128], strides = [1, 1]} : vector<8x384xf32> to vector<8x128xf32>
    %82 = vector.extract_strided_slice %79 {offsets = [0, 256], sizes = [8, 128], strides = [1, 1]} : vector<8x384xf32> to vector<8x128xf32>
    %83 = vector.extract_strided_slice %73 {offsets = [0, 384], sizes = [8, 128], strides = [1, 1]} : vector<8x512xf32> to vector<8x128xf32>
    %84 = math.tanh %83 : vector<8x128xf32>
    %85 = arith.mulf %81, %68 : vector<8x128xf32>
    %86 = arith.mulf %80, %84 : vector<8x128xf32>
    %87 = arith.addf %85, %86 : vector<8x128xf32>
    %88 = math.tanh %87 : vector<8x128xf32>
    %89 = arith.mulf %82, %88 : vector<8x128xf32>
    %90 = vector.extract_strided_slice %10 {offsets = [0, 2], sizes = [8, 1], strides = [1, 1]} : vector<8x8xi1> to vector<8x1xi1>
    %91 = vector.shape_cast %90 : vector<8x1xi1> to vector<8x1xi1>
    %92 = vector.broadcast %91 : vector<8x1xi1> to vector<8x128xi1>
    %93 = arith.select %92, %89, %65 : vector<8x128xi1>, vector<8x128xf32>
    %94 = vector.shape_cast %90 : vector<8x1xi1> to vector<8x1xi1>
    %95 = vector.broadcast %94 : vector<8x1xi1> to vector<8x128xi1>
    %96 = arith.select %95, %87, %68 : vector<8x128xi1>, vector<8x128xf32>
    %c24 = arith.constant 24 : index
    %c0_27 = arith.constant 0 : index
    %97 = vector.load %arg6[%c24, %c0_27] : memref<64x512xf32, #tpu.memory_space<vmem>>, vector<8x512xf32>
    %98 = arith.truncf %93 : vector<8x128xf32> to vector<8x128xbf16>
    %c0_28 = arith.constant 0 : index
    %c0_29 = arith.constant 0 : index
    %99 = vector.load %arg2[%c0_28, %c0_29] : memref<128x512xbf16, #tpu.memory_space<vmem>>, vector<128x512xbf16>
    %cst_30 = arith.constant dense<0.000000e+00> : vector<8x512xf32>
    %100 = tpu.matmul %98, %99, %cst_30 {dimension_numbers = #tpu.dot_dimension_numbers<[1], [0], [0], [1], [0, 0, 1, 1], [], []>} : vector<8x128xbf16>, vector<128x512xbf16>, vector<8x512xf32> -> vector<8x512xf32>
    %101 = arith.addf %97, %100 : vector<8x512xf32>
    %102 = vector.extract_strided_slice %101 {offsets = [0, 0], sizes = [8, 384], strides = [1, 1]} : vector<8x512xf32> to vector<8x384xf32>
    %103 = arith.negf %102 : vector<8x384xf32>
    %104 = math.exp %103 : vector<8x384xf32>
    %cst_31 = arith.constant 1.000000e+00 : f32
    %105 = vector.broadcast %cst_31 : f32 to vector<8x384xf32>
    %106 = arith.addf %105, %104 : vector<8x384xf32>
    %107 = arith.divf %105, %106 : vector<8x384xf32>
    %108 = vector.extract_strided_slice %107 {offsets = [0, 0], sizes = [8, 128], strides = [1, 1]} : vector<8x384xf32> to vector<8x128xf32>
    %109 = vector.extract_strided_slice %107 {offsets = [0, 128], sizes = [8, 128], strides = [1, 1]} : vector<8x384xf32> to vector<8x128xf32>
    %110 = vector.extract_strided_slice %107 {offsets = [0, 256], sizes = [8, 128], strides = [1, 1]} : vector<8x384xf32> to vector<8x128xf32>
    %111 = vector.extract_strided_slice %101 {offsets = [0, 384], sizes = [8, 128], strides = [1, 1]} : vector<8x512xf32> to vector<8x128xf32>
    %112 = math.tanh %111 : vector<8x128xf32>
    %113 = arith.mulf %109, %96 : vector<8x128xf32>
    %114 = arith.mulf %108, %112 : vector<8x128xf32>
    %115 = arith.addf %113, %114 : vector<8x128xf32>
    %116 = math.tanh %115 : vector<8x128xf32>
    %117 = arith.mulf %110, %116 : vector<8x128xf32>
    %118 = vector.extract_strided_slice %10 {offsets = [0, 3], sizes = [8, 1], strides = [1, 1]} : vector<8x8xi1> to vector<8x1xi1>
    %119 = vector.shape_cast %118 : vector<8x1xi1> to vector<8x1xi1>
    %120 = vector.broadcast %119 : vector<8x1xi1> to vector<8x128xi1>
    %121 = arith.select %120, %117, %93 : vector<8x128xi1>, vector<8x128xf32>
    %122 = vector.shape_cast %118 : vector<8x1xi1> to vector<8x1xi1>
    %123 = vector.broadcast %122 : vector<8x1xi1> to vector<8x128xi1>
    %124 = arith.select %123, %115, %96 : vector<8x128xi1>, vector<8x128xf32>
    %c32 = arith.constant 32 : index
    %c0_32 = arith.constant 0 : index
    %125 = vector.load %arg6[%c32, %c0_32] : memref<64x512xf32, #tpu.memory_space<vmem>>, vector<8x512xf32>
    %126 = arith.truncf %121 : vector<8x128xf32> to vector<8x128xbf16>
    %c0_33 = arith.constant 0 : index
    %c0_34 = arith.constant 0 : index
    %127 = vector.load %arg2[%c0_33, %c0_34] : memref<128x512xbf16, #tpu.memory_space<vmem>>, vector<128x512xbf16>
    %cst_35 = arith.constant dense<0.000000e+00> : vector<8x512xf32>
    %128 = tpu.matmul %126, %127, %cst_35 {dimension_numbers = #tpu.dot_dimension_numbers<[1], [0], [0], [1], [0, 0, 1, 1], [], []>} : vector<8x128xbf16>, vector<128x512xbf16>, vector<8x512xf32> -> vector<8x512xf32>
    %129 = arith.addf %125, %128 : vector<8x512xf32>
    %130 = vector.extract_strided_slice %129 {offsets = [0, 0], sizes = [8, 384], strides = [1, 1]} : vector<8x512xf32> to vector<8x384xf32>
    %131 = arith.negf %130 : vector<8x384xf32>
    %132 = math.exp %131 : vector<8x384xf32>
    %cst_36 = arith.constant 1.000000e+00 : f32
    %133 = vector.broadcast %cst_36 : f32 to vector<8x384xf32>
    %134 = arith.addf %133, %132 : vector<8x384xf32>
    %135 = arith.divf %133, %134 : vector<8x384xf32>
    %136 = vector.extract_strided_slice %135 {offsets = [0, 0], sizes = [8, 128], strides = [1, 1]} : vector<8x384xf32> to vector<8x128xf32>
    %137 = vector.extract_strided_slice %135 {offsets = [0, 128], sizes = [8, 128], strides = [1, 1]} : vector<8x384xf32> to vector<8x128xf32>
    %138 = vector.extract_strided_slice %135 {offsets = [0, 256], sizes = [8, 128], strides = [1, 1]} : vector<8x384xf32> to vector<8x128xf32>
    %139 = vector.extract_strided_slice %129 {offsets = [0, 384], sizes = [8, 128], strides = [1, 1]} : vector<8x512xf32> to vector<8x128xf32>
    %140 = math.tanh %139 : vector<8x128xf32>
    %141 = arith.mulf %137, %124 : vector<8x128xf32>
    %142 = arith.mulf %136, %140 : vector<8x128xf32>
    %143 = arith.addf %141, %142 : vector<8x128xf32>
    %144 = math.tanh %143 : vector<8x128xf32>
    %145 = arith.mulf %138, %144 : vector<8x128xf32>
    %146 = vector.extract_strided_slice %10 {offsets = [0, 4], sizes = [8, 1], strides = [1, 1]} : vector<8x8xi1> to vector<8x1xi1>
    %147 = vector.shape_cast %146 : vector<8x1xi1> to vector<8x1xi1>
    %148 = vector.broadcast %147 : vector<8x1xi1> to vector<8x128xi1>
    %149 = arith.select %148, %145, %121 : vector<8x128xi1>, vector<8x128xf32>
    %150 = vector.shape_cast %146 : vector<8x1xi1> to vector<8x1xi1>
    %151 = vector.broadcast %150 : vector<8x1xi1> to vector<8x128xi1>
    %152 = arith.select %151, %143, %124 : vector<8x128xi1>, vector<8x128xf32>
    %c40 = arith.constant 40 : index
    %c0_37 = arith.constant 0 : index
    %153 = vector.load %arg6[%c40, %c0_37] : memref<64x512xf32, #tpu.memory_space<vmem>>, vector<8x512xf32>
    %154 = arith.truncf %149 : vector<8x128xf32> to vector<8x128xbf16>
    %c0_38 = arith.constant 0 : index
    %c0_39 = arith.constant 0 : index
    %155 = vector.load %arg2[%c0_38, %c0_39] : memref<128x512xbf16, #tpu.memory_space<vmem>>, vector<128x512xbf16>
    %cst_40 = arith.constant dense<0.000000e+00> : vector<8x512xf32>
    %156 = tpu.matmul %154, %155, %cst_40 {dimension_numbers = #tpu.dot_dimension_numbers<[1], [0], [0], [1], [0, 0, 1, 1], [], []>} : vector<8x128xbf16>, vector<128x512xbf16>, vector<8x512xf32> -> vector<8x512xf32>
    %157 = arith.addf %153, %156 : vector<8x512xf32>
    %158 = vector.extract_strided_slice %157 {offsets = [0, 0], sizes = [8, 384], strides = [1, 1]} : vector<8x512xf32> to vector<8x384xf32>
    %159 = arith.negf %158 : vector<8x384xf32>
    %160 = math.exp %159 : vector<8x384xf32>
    %cst_41 = arith.constant 1.000000e+00 : f32
    %161 = vector.broadcast %cst_41 : f32 to vector<8x384xf32>
    %162 = arith.addf %161, %160 : vector<8x384xf32>
    %163 = arith.divf %161, %162 : vector<8x384xf32>
    %164 = vector.extract_strided_slice %163 {offsets = [0, 0], sizes = [8, 128], strides = [1, 1]} : vector<8x384xf32> to vector<8x128xf32>
    %165 = vector.extract_strided_slice %163 {offsets = [0, 128], sizes = [8, 128], strides = [1, 1]} : vector<8x384xf32> to vector<8x128xf32>
    %166 = vector.extract_strided_slice %163 {offsets = [0, 256], sizes = [8, 128], strides = [1, 1]} : vector<8x384xf32> to vector<8x128xf32>
    %167 = vector.extract_strided_slice %157 {offsets = [0, 384], sizes = [8, 128], strides = [1, 1]} : vector<8x512xf32> to vector<8x128xf32>
    %168 = math.tanh %167 : vector<8x128xf32>
    %169 = arith.mulf %165, %152 : vector<8x128xf32>
    %170 = arith.mulf %164, %168 : vector<8x128xf32>
    %171 = arith.addf %169, %170 : vector<8x128xf32>
    %172 = math.tanh %171 : vector<8x128xf32>
    %173 = arith.mulf %166, %172 : vector<8x128xf32>
    %174 = vector.extract_strided_slice %10 {offsets = [0, 5], sizes = [8, 1], strides = [1, 1]} : vector<8x8xi1> to vector<8x1xi1>
    %175 = vector.shape_cast %174 : vector<8x1xi1> to vector<8x1xi1>
    %176 = vector.broadcast %175 : vector<8x1xi1> to vector<8x128xi1>
    %177 = arith.select %176, %173, %149 : vector<8x128xi1>, vector<8x128xf32>
    %178 = vector.shape_cast %174 : vector<8x1xi1> to vector<8x1xi1>
    %179 = vector.broadcast %178 : vector<8x1xi1> to vector<8x128xi1>
    %180 = arith.select %179, %171, %152 : vector<8x128xi1>, vector<8x128xf32>
    %c48 = arith.constant 48 : index
    %c0_42 = arith.constant 0 : index
    %181 = vector.load %arg6[%c48, %c0_42] : memref<64x512xf32, #tpu.memory_space<vmem>>, vector<8x512xf32>
    %182 = arith.truncf %177 : vector<8x128xf32> to vector<8x128xbf16>
    %c0_43 = arith.constant 0 : index
    %c0_44 = arith.constant 0 : index
    %183 = vector.load %arg2[%c0_43, %c0_44] : memref<128x512xbf16, #tpu.memory_space<vmem>>, vector<128x512xbf16>
    %cst_45 = arith.constant dense<0.000000e+00> : vector<8x512xf32>
    %184 = tpu.matmul %182, %183, %cst_45 {dimension_numbers = #tpu.dot_dimension_numbers<[1], [0], [0], [1], [0, 0, 1, 1], [], []>} : vector<8x128xbf16>, vector<128x512xbf16>, vector<8x512xf32> -> vector<8x512xf32>
    %185 = arith.addf %181, %184 : vector<8x512xf32>
    %186 = vector.extract_strided_slice %185 {offsets = [0, 0], sizes = [8, 384], strides = [1, 1]} : vector<8x512xf32> to vector<8x384xf32>
    %187 = arith.negf %186 : vector<8x384xf32>
    %188 = math.exp %187 : vector<8x384xf32>
    %cst_46 = arith.constant 1.000000e+00 : f32
    %189 = vector.broadcast %cst_46 : f32 to vector<8x384xf32>
    %190 = arith.addf %189, %188 : vector<8x384xf32>
    %191 = arith.divf %189, %190 : vector<8x384xf32>
    %192 = vector.extract_strided_slice %191 {offsets = [0, 0], sizes = [8, 128], strides = [1, 1]} : vector<8x384xf32> to vector<8x128xf32>
    %193 = vector.extract_strided_slice %191 {offsets = [0, 128], sizes = [8, 128], strides = [1, 1]} : vector<8x384xf32> to vector<8x128xf32>
    %194 = vector.extract_strided_slice %191 {offsets = [0, 256], sizes = [8, 128], strides = [1, 1]} : vector<8x384xf32> to vector<8x128xf32>
    %195 = vector.extract_strided_slice %185 {offsets = [0, 384], sizes = [8, 128], strides = [1, 1]} : vector<8x512xf32> to vector<8x128xf32>
    %196 = math.tanh %195 : vector<8x128xf32>
    %197 = arith.mulf %193, %180 : vector<8x128xf32>
    %198 = arith.mulf %192, %196 : vector<8x128xf32>
    %199 = arith.addf %197, %198 : vector<8x128xf32>
    %200 = math.tanh %199 : vector<8x128xf32>
    %201 = arith.mulf %194, %200 : vector<8x128xf32>
    %202 = vector.extract_strided_slice %10 {offsets = [0, 6], sizes = [8, 1], strides = [1, 1]} : vector<8x8xi1> to vector<8x1xi1>
    %203 = vector.shape_cast %202 : vector<8x1xi1> to vector<8x1xi1>
    %204 = vector.broadcast %203 : vector<8x1xi1> to vector<8x128xi1>
    %205 = arith.select %204, %201, %177 : vector<8x128xi1>, vector<8x128xf32>
    %206 = vector.shape_cast %202 : vector<8x1xi1> to vector<8x1xi1>
    %207 = vector.broadcast %206 : vector<8x1xi1> to vector<8x128xi1>
    %208 = arith.select %207, %199, %180 : vector<8x128xi1>, vector<8x128xf32>
    %c56 = arith.constant 56 : index
    %c0_47 = arith.constant 0 : index
    %209 = vector.load %arg6[%c56, %c0_47] : memref<64x512xf32, #tpu.memory_space<vmem>>, vector<8x512xf32>
    %210 = arith.truncf %205 : vector<8x128xf32> to vector<8x128xbf16>
    %c0_48 = arith.constant 0 : index
    %c0_49 = arith.constant 0 : index
    %211 = vector.load %arg2[%c0_48, %c0_49] : memref<128x512xbf16, #tpu.memory_space<vmem>>, vector<128x512xbf16>
    %cst_50 = arith.constant dense<0.000000e+00> : vector<8x512xf32>
    %212 = tpu.matmul %210, %211, %cst_50 {dimension_numbers = #tpu.dot_dimension_numbers<[1], [0], [0], [1], [0, 0, 1, 1], [], []>} : vector<8x128xbf16>, vector<128x512xbf16>, vector<8x512xf32> -> vector<8x512xf32>
    %213 = arith.addf %209, %212 : vector<8x512xf32>
    %214 = vector.extract_strided_slice %213 {offsets = [0, 0], sizes = [8, 384], strides = [1, 1]} : vector<8x512xf32> to vector<8x384xf32>
    %215 = arith.negf %214 : vector<8x384xf32>
    %216 = math.exp %215 : vector<8x384xf32>
    %cst_51 = arith.constant 1.000000e+00 : f32
    %217 = vector.broadcast %cst_51 : f32 to vector<8x384xf32>
    %218 = arith.addf %217, %216 : vector<8x384xf32>
    %219 = arith.divf %217, %218 : vector<8x384xf32>
    %220 = vector.extract_strided_slice %219 {offsets = [0, 0], sizes = [8, 128], strides = [1, 1]} : vector<8x384xf32> to vector<8x128xf32>
    %221 = vector.extract_strided_slice %219 {offsets = [0, 128], sizes = [8, 128], strides = [1, 1]} : vector<8x384xf32> to vector<8x128xf32>
    %222 = vector.extract_strided_slice %219 {offsets = [0, 256], sizes = [8, 128], strides = [1, 1]} : vector<8x384xf32> to vector<8x128xf32>
    %223 = vector.extract_strided_slice %213 {offsets = [0, 384], sizes = [8, 128], strides = [1, 1]} : vector<8x512xf32> to vector<8x128xf32>
    %224 = math.tanh %223 : vector<8x128xf32>
    %225 = arith.mulf %221, %208 : vector<8x128xf32>
    %226 = arith.mulf %220, %224 : vector<8x128xf32>
    %227 = arith.addf %225, %226 : vector<8x128xf32>
    %228 = math.tanh %227 : vector<8x128xf32>
    %229 = arith.mulf %222, %228 : vector<8x128xf32>
    %230 = vector.extract_strided_slice %10 {offsets = [0, 7], sizes = [8, 1], strides = [1, 1]} : vector<8x8xi1> to vector<8x1xi1>
    %231 = vector.shape_cast %230 : vector<8x1xi1> to vector<8x1xi1>
    %232 = vector.broadcast %231 : vector<8x1xi1> to vector<8x128xi1>
    %233 = arith.select %232, %229, %205 : vector<8x128xi1>, vector<8x128xf32>
    %c0_52 = arith.constant 0 : index
    %c0_53 = arith.constant 0 : index
    %234 = vector.load %arg5[%c0_52, %c0_53] : memref<8x128xf32, #tpu.memory_space<vmem>>, vector<8x128xf32>
    tpu.vector_store %arg5[%c0_52, %c0_53], %233 {strides = array<i32>} : memref<8x128xf32, #tpu.memory_space<vmem>>, vector<8x128xf32>,
    return
  }
}

</mosaic_0001>

<llo_original>
// kernel: tpu_custom_call.1
$region0: #{tpu_custom_call.1}
  #allocation0 [shape = 'u32[]', space=smem, size = 0x4, offset = 0x4, fixed_abs, tag = 'smem constant byte address 0x4 - core index']
  #allocation1 [shape = 'u32[72,128]{1,0:T(1,128)}', space=vmem, size = 0x9000, scoped, tag = 'internal scratch']
  #allocation2 [shape = 'f32[64,512]{1,0:T(8,128)}', space=vmem, size = 0x20000, scoped, tag = 'scratch operand']
  %s0 = inlined_call_operand.hbm [shape: bf16[64,128], index: 0, kind: input, shape index: {}]
  %s1 = inlined_call_operand.hbm [shape: bf16[128,512], index: 1, kind: input, shape index: {}]
  %s2 = inlined_call_operand.hbm [shape: bf16[128,512], index: 2, kind: input, shape index: {}]
  %s3 = inlined_call_operand.vmem [shape: f32[1,512], index: 3, kind: input, shape index: {}]
  %s4 = inlined_call_operand.vmem [shape: s32[8,1], index: 4, kind: input, shape index: {}]
  %s5 = inlined_call_operand.hbm [shape: f32[8,128], index: 5, kind: output, shape index: {}]
  %s6 = sld [smem:[#allocation0]]
  $region42: #{tpu_custom_call.1} parent=0
    _
  %s8 = ssub.s32 1, %s6
  %s9 = scalar_select 0, %s8, %s6
  $region1: #{tpu_custom_call.1} parent=0
    #allocation3 [shape = 'u8[16384]{0}', space=vmem, size = 0x4000, scoped, tag = 'input window, operand 0, single buffered']
    #allocation4 [shape = 's32[1]{0}', space=sflag, size = 0x4, scoped, tag = 'scoped memory for tpu_custom_call.1']
    #allocation5 [shape = 's32[1]{0}', space=sflag, size = 0x4, scoped, tag = 'scoped memory for tpu_custom_call.1']
    #allocation6 [shape = 'u8[131072]{0}', space=vmem, size = 0x20000, scoped, tag = 'input window, operand 1, single buffered']
    #allocation7 [shape = 's32[1]{0}', space=sflag, size = 0x4, scoped, tag = 'scoped memory for tpu_custom_call.1']
    #allocation8 [shape = 'u8[131072]{0}', space=vmem, size = 0x20000, scoped, tag = 'input window, operand 2, single buffered']
    #allocation9 [shape = 'u8[4096]{0}', space=vmem, size = 0x1000, scoped, tag = 'output window, operand 0, single buffered']
    %10 = vsyncpa [#allocation4], 0
    %11 = vsyncpa [#allocation7], 0
    %12 = vsyncpa [#allocation5], 0
    // Predicated region
    $region2: #{tpu_custom_call.1} parent=1 // pred_check
      _
    $region3: #{tpu_custom_call.1} parent=1 // pred_check_branch
      %14 = sbr.rel (0) target = $region5
    $region4: #{tpu_custom_call.1} parent=1 // pred_region
      %16 = vsyncadd [#allocation4], 0
      %s17 = sshll.u32 %s0, 4
      %s18 = int_to_ptr.hbm [resolvable:$true] %s17
      %s19 = sshll.u32 [#allocation3], 4
      %s20 = int_to_ptr.vmem [resolvable:$true] %s19
      %25 = dma.hbm_to_vmem [thread:$0]  %s18, 512, %s20, [#allocation4], 64, 64, 4
    $region5: #{tpu_custom_call.1} parent=1 // pred_fallthru
      _
    // Predicated region
    $region6: #{tpu_custom_call.1} parent=1 // pred_check
      _
    $region7: #{tpu_custom_call.1} parent=1 // pred_check_branch
      %27 = sbr.rel (0) target = $region9
    $region8: #{tpu_custom_call.1} parent=1 // pred_region
      %29 = vsyncadd [#allocation7], 0
      %s30 = sshll.u32 %s1, 4
      %s31 = int_to_ptr.hbm [resolvable:$true] %s30
      %s32 = sshll.u32 [#allocation6], 4
      %s33 = int_to_ptr.vmem [resolvable:$true] %s32
      %38 = dma.hbm_to_vmem [thread:$0]  %s31, 4096, %s33, [#allocation7], 256, 256, 16
    $region9: #{tpu_custom_call.1} parent=1 // pred_fallthru
      _
    // Predicated region
    $region10: #{tpu_custom_call.1} parent=1 // pred_check
      _
    $region11: #{tpu_custom_call.1} parent=1 // pred_check_branch
      %40 = sbr.rel (0) target = $region13
    $region12: #{tpu_custom_call.1} parent=1 // pred_region
      %42 = vsyncadd [#allocation7], 0
      %s43 = sshll.u32 %s2, 4
      %s44 = int_to_ptr.hbm [resolvable:$true] %s43
      %s45 = sshll.u32 [#allocation8], 4
      %s46 = int_to_ptr.vmem [resolvable:$true] %s45
      %51 = dma.hbm_to_vmem [thread:$0]  %s44, 4096, %s46, [#allocation7], 256, 256, 16
    $region13: #{tpu_custom_call.1} parent=1 // pred_fallthru
      _
    // Predicated region
    $region14: #{tpu_custom_call.1} parent=1 // pred_check
      _
    $region15: #{tpu_custom_call.1} parent=1 // pred_check_branch
      %53 = sbr.rel (0) target = $region17
    $region16: #{tpu_custom_call.1} parent=1 // pred_region
      _
    $region17: #{tpu_custom_call.1} parent=1 // pred_fallthru
      _
    // Predicated region
    $region18: #{tpu_custom_call.1} parent=1 // pred_check
      _
    $region19: #{tpu_custom_call.1} parent=1 // pred_check_branch
      %55 = sbr.rel (0) target = $region21
    $region20: #{tpu_custom_call.1} parent=1 // pred_region
      _
    $region21: #{tpu_custom_call.1} parent=1 // pred_fallthru
      _
    // Predicated region
    $region22: #{tpu_custom_call.1} parent=1 // pred_check
      _
    $region23: #{tpu_custom_call.1} parent=1 // pred_check_branch
      %57 = sbr.rel (0) target = $region25
    $region24: #{tpu_custom_call.1} parent=1 // pred_region
      %59 = dma.done [#allocation4], 512
    $region25: #{tpu_custom_call.1} parent=1 // pred_fallthru
      _
    // Predicated region
    $region26: #{tpu_custom_call.1} parent=1 // pred_check
      _
    $region27: #{tpu_custom_call.1} parent=1 // pred_check_branch
      %61 = sbr.rel (0) target = $region29
    $region28: #{tpu_custom_call.1} parent=1 // pred_region
      %63 = dma.done [#allocation7], 4096
    $region29: #{tpu_custom_call.1} parent=1 // pred_fallthru
      _
    // Predicated region
    $region30: #{tpu_custom_call.1} parent=1 // pred_check
      _
    $region31: #{tpu_custom_call.1} parent=1 // pred_check_branch
      %65 = sbr.rel (0) target = $region33
    $region32: #{tpu_custom_call.1} parent=1 // pred_region
      %67 = dma.done [#allocation7], 4096
    $region33: #{tpu_custom_call.1} parent=1 // pred_fallthru
      _
    %v69 = vld [vmem:[#allocation3] sm:$0xf]
    %v70 = vld [vmem:[#allocation3 + $0x4] sm:$0xf]
    %v71 = vld [vmem:[#allocation3 + $0x8] sm:$0xf]
    %v72 = vld [vmem:[#allocation3 + $0xc] sm:$0xf]
    %v73 = vld [vmem:[#allocation3 + $0x10] sm:$0xf]
    %v74 = vld [vmem:[#allocation3 + $0x14] sm:$0xf]
    %v75 = vld [vmem:[#allocation3 + $0x18] sm:$0xf]
    %v76 = vld [vmem:[#allocation3 + $0x1c] sm:$0xf]
    %v77 = vld [vmem:[#allocation6] sm:$0xff]
    %v78 = vld [vmem:[#allocation6 + $0x8] sm:$0xff]
    %v79 = vld [vmem:[#allocation6 + $0x10] sm:$0xff]
    %v80 = vld [vmem:[#allocation6 + $0x18] sm:$0xff]
    %v81 = vld [vmem:[#allocation6 + $0x20] sm:$0xff]
    %v82 = vld [vmem:[#allocation6 + $0x28] sm:$0xff]
    %v83 = vld [vmem:[#allocation6 + $0x30] sm:$0xff]
    %v84 = vld [vmem:[#allocation6 + $0x38] sm:$0xff]
    %v85 = vld [vmem:[#allocation6 + $0x40] sm:$0xff]
    %v86 = vld [vmem:[#allocation6 + $0x48] sm:$0xff]
    %v87 = vld [vmem:[#allocation6 + $0x50] sm:$0xff]
    %v88 = vld [vmem:[#allocation6 + $0x58] sm:$0xff]
    %v89 = vld [vmem:[#allocation6 + $0x60] sm:$0xff]
    %v90 = vld [vmem:[#allocation6 + $0x68] sm:$0xff]
    %v91 = vld [vmem:[#allocation6 + $0x70] sm:$0xff]
    %v92 = vld [vmem:[#allocation6 + $0x78] sm:$0xff]
    %v93 = vld [vmem:[#allocation6 + $0x80] sm:$0xff]
    %v94 = vld [vmem:[#allocation6 + $0x88] sm:$0xff]
    %v95 = vld [vmem:[#allocation6 + $0x90] sm:$0xff]
    %v96 = vld [vmem:[#allocation6 + $0x98] sm:$0xff]
    %v97 = vld [vmem:[#allocation6 + $0xa0] sm:$0xff]
    %v98 = vld [vmem:[#allocation6 + $0xa8] sm:$0xff]
    %v99 = vld [vmem:[#allocation6 + $0xb0] sm:$0xff]
    %v100 = vld [vmem:[#allocation6 + $0xb8] sm:$0xff]
    %v101 = vld [vmem:[#allocation6 + $0xc0] sm:$0xff]
    %v102 = vld [vmem:[#allocation6 + $0xc8] sm:$0xff]
    %v103 = vld [vmem:[#allocation6 + $0xd0] sm:$0xff]
    %v104 = vld [vmem:[#allocation6 + $0xd8] sm:$0xff]
    %v105 = vld [vmem:[#allocation6 + $0xe0] sm:$0xff]
    %v106 = vld [vmem:[#allocation6 + $0xe8] sm:$0xff]
    %v107 = vld [vmem:[#allocation6 + $0xf0] sm:$0xff]
    %v108 = vld [vmem:[#allocation6 + $0xf8] sm:$0xff]
    %v109 = vld [vmem:[%s3] sm:$0xf]
    %v111 = vperm.slane %v109, 0
    %v112 = vperm.slane %v109, 1
    %v113 = vperm.slane %v109, 2
    %v114 = vperm.slane %v109, 3
    %v127 = vunpack.c.l.b16 %v69
    %v128 = vunpack.c.l.b16 %v70
    %v129 = vunpack.c.l.b16 %v71
    %v130 = vunpack.c.l.b16 %v72
    %v131 = vunpack.c.l.b16 %v73
    %v132 = vunpack.c.l.b16 %v74
    %v133 = vunpack.c.l.b16 %v75
    %v134 = vunpack.c.l.b16 %v76
    %v135 = vpack.c.b16 %v128, %v127
    %v136 = vpack.c.b16 %v130, %v129
    %v137 = vpack.c.b16 %v132, %v131
    %v138 = vpack.c.b16 %v134, %v133
    %v175 = vunpack.c.l.b16 %v77
    %v176 = vunpack.c.h.b16 %v77
    %v177 = vunpack.c.l.b16 %v78
    %v178 = vunpack.c.h.b16 %v78
    %v179 = vunpack.c.l.b16 %v79
    %v180 = vunpack.c.h.b16 %v79
    %v181 = vunpack.c.l.b16 %v80
    %v182 = vunpack.c.h.b16 %v80
    %v183 = vunpack.c.l.b16 %v81
    %v184 = vunpack.c.h.b16 %v81
    %v185 = vunpack.c.l.b16 %v82
    %v186 = vunpack.c.h.b16 %v82
    %v187 = vunpack.c.l.b16 %v83
    %v188 = vunpack.c.h.b16 %v83
    %v189 = vunpack.c.l.b16 %v84
    %v190 = vunpack.c.h.b16 %v84
    %v191 = vunpack.c.l.b16 %v85
    %v192 = vunpack.c.h.b16 %v85
    %v193 = vunpack.c.l.b16 %v86
    %v194 = vunpack.c.h.b16 %v86
    %v195 = vunpack.c.l.b16 %v87
    %v196 = vunpack.c.h.b16 %v87
    %v197 = vunpack.c.l.b16 %v88
    %v198 = vunpack.c.h.b16 %v88
    %v199 = vunpack.c.l.b16 %v89
    %v200 = vunpack.c.h.b16 %v89
    %v201 = vunpack.c.l.b16 %v90
    %v202 = vunpack.c.h.b16 %v90
    %v203 = vunpack.c.l.b16 %v91
    %v204 = vunpack.c.h.b16 %v91
    %v205 = vunpack.c.l.b16 %v92
    %v206 = vunpack.c.h.b16 %v92
    %v207 = vunpack.c.l.b16 %v93
    %v208 = vunpack.c.h.b16 %v93
    %v209 = vunpack.c.l.b16 %v94
    %v210 = vunpack.c.h.b16 %v94
    %v211 = vunpack.c.l.b16 %v95
    %v212 = vunpack.c.h.b16 %v95
    %v213 = vunpack.c.l.b16 %v96
    %v214 = vunpack.c.h.b16 %v96
    %v215 = vunpack.c.l.b16 %v97
    %v216 = vunpack.c.h.b16 %v97
    %v217 = vunpack.c.l.b16 %v98
    %v218 = vunpack.c.h.b16 %v98
    %v219 = vunpack.c.l.b16 %v99
    %v220 = vunpack.c.h.b16 %v99
    %v221 = vunpack.c.l.b16 %v100
    %v222 = vunpack.c.h.b16 %v100
    %v223 = vunpack.c.l.b16 %v101
    %v224 = vunpack.c.h.b16 %v101
    %v225 = vunpack.c.l.b16 %v102
    %v226 = vunpack.c.h.b16 %v102
    %v227 = vunpack.c.l.b16 %v103
    %v228 = vunpack.c.h.b16 %v103
    %v229 = vunpack.c.l.b16 %v104
    %v230 = vunpack.c.h.b16 %v104
    %v231 = vunpack.c.l.b16 %v105
    %v232 = vunpack.c.h.b16 %v105
    %v233 = vunpack.c.l.b16 %v106
    %v234 = vunpack.c.h.b16 %v106
    %v235 = vunpack.c.l.b16 %v107
    %v236 = vunpack.c.h.b16 %v107
    %v237 = vunpack.c.l.b16 %v108
    %v238 = vunpack.c.h.b16 %v108
    %v239 = vpack.c.b16 %v179, %v175
    %v240 = vpack.c.b16 %v180, %v176
    %v241 = vpack.c.b16 %v181, %v177
    %v242 = vpack.c.b16 %v182, %v178
    %v243 = vpack.c.b16 %v187, %v183
    %v244 = vpack.c.b16 %v188, %v184
    %v245 = vpack.c.b16 %v189, %v185
    %v246 = vpack.c.b16 %v190, %v186
    %v247 = vpack.c.b16 %v195, %v191
    %v248 = vpack.c.b16 %v196, %v192
    %v249 = vpack.c.b16 %v197, %v193
    %v250 = vpack.c.b16 %v198, %v194
    %v251 = vpack.c.b16 %v203, %v199
    %v252 = vpack.c.b16 %v204, %v200
    %v253 = vpack.c.b16 %v205, %v201
    %v254 = vpack.c.b16 %v206, %v202
    %v255 = vpack.c.b16 %v211, %v207
    %v256 = vpack.c.b16 %v212, %v208
    %v257 = vpack.c.b16 %v213, %v209
    %v258 = vpack.c.b16 %v214, %v210
    %v259 = vpack.c.b16 %v219, %v215
    %v260 = vpack.c.b16 %v220, %v216
    %v261 = vpack.c.b16 %v221, %v217
    %v262 = vpack.c.b16 %v222, %v218
    %v263 = vpack.c.b16 %v227, %v223
    %v264 = vpack.c.b16 %v228, %v224
    %v265 = vpack.c.b16 %v229, %v225
    %v266 = vpack.c.b16 %v230, %v226
    %v267 = vpack.c.b16 %v235, %v231
    %v268 = vpack.c.b16 %v236, %v232
    %v269 = vpack.c.b16 %v237, %v233
    %v270 = vpack.c.b16 %v238, %v234
    %303 = vmatpush.bf16.msra.mxu0 %v267
    %304 = vmatpush.bf16.msra.mxu0 %v263
    %305 = vmatpush.bf16.msra.mxu0 %v259
    %306 = vmatpush.bf16.msra.mxu0 %v255
    %307 = vmatpush.bf16.msra.mxu0 %v251
    %308 = vmatpush.bf16.msra.mxu0 %v247
    %309 = vmatpush.bf16.msra.mxu0 %v243
    %310 = vmatpush.bf16.msra.mxu0 %v239
    %311 = vmatmul.bf16.gmra.mxu0 %v135
    %v312 = vpop.f32.mrf.mxu0
    %v313 = vadd.f32 %v111, %v312
    %v314 = vpop.f32.mrf.mxu0
    %v315 = vadd.f32 %v111, %v314
    %316 = vmatmul.bf16.gmra.mxu0 %v136
    %v317 = vpop.f32.mrf.mxu0
    %v318 = vadd.f32 %v111, %v317
    %v319 = vpop.f32.mrf.mxu0
    %v320 = vadd.f32 %v111, %v319
    %321 = vmatmul.bf16.gmra.mxu0 %v137
    %v322 = vpop.f32.mrf.mxu0
    %v323 = vadd.f32 %v111, %v322
    %v324 = vpop.f32.mrf.mxu0
    %v325 = vadd.f32 %v111, %v324
    %326 = vmatmul.bf16.gmra.mxu0 %v138
    %v327 = vpop.f32.mrf.mxu0
    %v328 = vadd.f32 %v111, %v327
    %v329 = vpop.f32.mrf.mxu0
    %v330 = vadd.f32 %v111, %v329
    %331 = vdwg.mxu0
    %332 = vmatpush.bf16.msra.mxu0 %v268
    %333 = vmatpush.bf16.msra.mxu0 %v264
    %334 = vmatpush.bf16.msra.mxu0 %v260
    %335 = vmatpush.bf16.msra.mxu0 %v256
    %336 = vmatpush.bf16.msra.mxu0 %v252
    %337 = vmatpush.bf16.msra.mxu0 %v248
    %338 = vmatpush.bf16.msra.mxu0 %v244
    %339 = vmatpush.bf16.msra.mxu0 %v240
    %340 = vmatmul.bf16.gmra.mxu0 %v135
    %v341 = vpop.f32.mrf.mxu0
    %v342 = vadd.f32 %v112, %v341
    %v343 = vpop.f32.mrf.mxu0
    %v344 = vadd.f32 %v112, %v343
    %345 = vmatmul.bf16.gmra.mxu0 %v136
    %v346 = vpop.f32.mrf.mxu0
    %v347 = vadd.f32 %v112, %v346
    %v348 = vpop.f32.mrf.mxu0
    %v349 = vadd.f32 %v112, %v348
    %350 = vmatmul.bf16.gmra.mxu0 %v137
    %v351 = vpop.f32.mrf.mxu0
    %v352 = vadd.f32 %v112, %v351
    %v353 = vpop.f32.mrf.mxu0
    %v354 = vadd.f32 %v112, %v353
    %355 = vmatmul.bf16.gmra.mxu0 %v138
    %v356 = vpop.f32.mrf.mxu0
    %v357 = vadd.f32 %v112, %v356
    %v358 = vpop.f32.mrf.mxu0
    %v359 = vadd.f32 %v112, %v358
    %360 = vdwg.mxu0
    %361 = vmatpush.bf16.msra.mxu0 %v269
    %362 = vmatpush.bf16.msra.mxu0 %v265
    %363 = vmatpush.bf16.msra.mxu0 %v261
    %364 = vmatpush.bf16.msra.mxu0 %v257
    %365 = vmatpush.bf16.msra.mxu0 %v253
    %366 = vmatpush.bf16.msra.mxu0 %v249
    %367 = vmatpush.bf16.msra.mxu0 %v245
    %368 = vmatpush.bf16.msra.mxu0 %v241
    %369 = vmatmul.bf16.gmra.mxu0 %v135
    %v370 = vpop.f32.mrf.mxu0
    %v371 = vadd.f32 %v113, %v370
    %v372 = vpop.f32.mrf.mxu0
    %v373 = vadd.f32 %v113, %v372
    %374 = vmatmul.bf16.gmra.mxu0 %v136
    %v375 = vpop.f32.mrf.mxu0
    %v376 = vadd.f32 %v113, %v375
    %v377 = vpop.f32.mrf.mxu0
    %v378 = vadd.f32 %v113, %v377
    %379 = vmatmul.bf16.gmra.mxu0 %v137
    %v380 = vpop.f32.mrf.mxu0
    %v381 = vadd.f32 %v113, %v380
    %v382 = vpop.f32.mrf.mxu0
    %v383 = vadd.f32 %v113, %v382
    %384 = vmatmul.bf16.gmra.mxu0 %v138
    %v385 = vpop.f32.mrf.mxu0
    %v386 = vadd.f32 %v113, %v385
    %v387 = vpop.f32.mrf.mxu0
    %v388 = vadd.f32 %v113, %v387
    %389 = vdwg.mxu0
    %390 = vmatpush.bf16.msra.mxu0 %v270
    %391 = vmatpush.bf16.msra.mxu0 %v266
    %392 = vmatpush.bf16.msra.mxu0 %v262
    %393 = vmatpush.bf16.msra.mxu0 %v258
    %394 = vmatpush.bf16.msra.mxu0 %v254
    %395 = vmatpush.bf16.msra.mxu0 %v250
    %396 = vmatpush.bf16.msra.mxu0 %v246
    %397 = vmatpush.bf16.msra.mxu0 %v242
    %398 = vmatmul.bf16.gmra.mxu0 %v135
    %v399 = vpop.f32.mrf.mxu0
    %v400 = vadd.f32 %v114, %v399
    %v401 = vpop.f32.mrf.mxu0
    %v402 = vadd.f32 %v114, %v401
    %403 = vmatmul.bf16.gmra.mxu0 %v136
    %v404 = vpop.f32.mrf.mxu0
    %v405 = vadd.f32 %v114, %v404
    %v406 = vpop.f32.mrf.mxu0
    %v407 = vadd.f32 %v114, %v406
    %408 = vmatmul.bf16.gmra.mxu0 %v137
    %v409 = vpop.f32.mrf.mxu0
    %v410 = vadd.f32 %v114, %v409
    %v411 = vpop.f32.mrf.mxu0
    %v412 = vadd.f32 %v114, %v411
    %413 = vmatmul.bf16.gmra.mxu0 %v138
    %v414 = vpop.f32.mrf.mxu0
    %v415 = vadd.f32 %v114, %v414
    %v416 = vpop.f32.mrf.mxu0
    %v417 = vadd.f32 %v114, %v416
    %418 = vdwg.mxu0
    %419 = vst [vmem:[#allocation2] sm:$0xff] %v313
    %420 = vst [vmem:[#allocation2 + $0x8] sm:$0xff] %v342
    %421 = vst [vmem:[#allocation2 + $0x10] sm:$0xff] %v371
    %422 = vst [vmem:[#allocation2 + $0x18] sm:$0xff] %v400
    %423 = vst [vmem:[#allocation2 + $0x20] sm:$0xff] %v315
    %424 = vst [vmem:[#allocation2 + $0x28] sm:$0xff] %v344
    %425 = vst [vmem:[#allocation2 + $0x30] sm:$0xff] %v373
    %426 = vst [vmem:[#allocation2 + $0x38] sm:$0xff] %v402
    %427 = vst [vmem:[#allocation2 + $0x40] sm:$0xff] %v318
    %428 = vst [vmem:[#allocation2 + $0x48] sm:$0xff] %v347
    %429 = vst [vmem:[#allocation2 + $0x50] sm:$0xff] %v376
    %430 = vst [vmem:[#allocation2 + $0x58] sm:$0xff] %v405
    %431 = vst [vmem:[#allocation2 + $0x60] sm:$0xff] %v320
    %432 = vst [vmem:[#allocation2 + $0x68] sm:$0xff] %v349
    %433 = vst [vmem:[#allocation2 + $0x70] sm:$0xff] %v378
    %434 = vst [vmem:[#allocation2 + $0x78] sm:$0xff] %v407
    %435 = vst [vmem:[#allocation2 + $0x80] sm:$0xff] %v323
    %436 = vst [vmem:[#allocation2 + $0x88] sm:$0xff] %v352
    %437 = vst [vmem:[#allocation2 + $0x90] sm:$0xff] %v381
    %438 = vst [vmem:[#allocation2 + $0x98] sm:$0xff] %v410
    %439 = vst [vmem:[#allocation2 + $0xa0] sm:$0xff] %v325
    %440 = vst [vmem:[#allocation2 + $0xa8] sm:$0xff] %v354
    %441 = vst [vmem:[#allocation2 + $0xb0] sm:$0xff] %v383
    %442 = vst [vmem:[#allocation2 + $0xb8] sm:$0xff] %v412
    %443 = vst [vmem:[#allocation2 + $0xc0] sm:$0xff] %v328
    %444 = vst [vmem:[#allocation2 + $0xc8] sm:$0xff] %v357
    %445 = vst [vmem:[#allocation2 + $0xd0] sm:$0xff] %v386
    %446 = vst [vmem:[#allocation2 + $0xd8] sm:$0xff] %v415
    %447 = vst [vmem:[#allocation2 + $0xe0] sm:$0xff] %v330
    %448 = vst [vmem:[#allocation2 + $0xe8] sm:$0xff] %v359
    %449 = vst [vmem:[#allocation2 + $0xf0] sm:$0xff] %v388
    %450 = vst [vmem:[#allocation2 + $0xf8] sm:$0xff] %v417
    %v451 = vld [vmem:[%s4] sm:$0xff]
    %v452 = vlaneseq
    %v453 = vand.u32 %v452, 127
    %454 = vset.pattern.permute.xlu0 0
    %455 = vperm.xlu0 %454, %v451
    %v456 = vpop.permute.xlu0 %455
    %vm457 = vcmp.gt.s32.totalorder %v456, %v453
    %v458 = vld [vmem:[#allocation2] sm:$0xff]
    %v459 = vld [vmem:[#allocation2 + $0x8] sm:$0xff]
    %v460 = vld [vmem:[#allocation2 + $0x10] sm:$0xff]
    %v461 = vld [vmem:[#allocation2 + $0x18] sm:$0xff]
    %v462 = vld [vmem:[#allocation8] sm:$0xff]
    %v463 = vld [vmem:[#allocation8 + $0x8] sm:$0xff]
    %v464 = vld [vmem:[#allocation8 + $0x10] sm:$0xff]
    %v465 = vld [vmem:[#allocation8 + $0x18] sm:$0xff]
    %v466 = vld [vmem:[#allocation8 + $0x20] sm:$0xff]
    %v467 = vld [vmem:[#allocation8 + $0x28] sm:$0xff]
    %v468 = vld [vmem:[#allocation8 + $0x30] sm:$0xff]
    %v469 = vld [vmem:[#allocation8 + $0x38] sm:$0xff]
    %v470 = vld [vmem:[#allocation8 + $0x40] sm:$0xff]
    %v471 = vld [vmem:[#allocation8 + $0x48] sm:$0xff]
    %v472 = vld [vmem:[#allocation8 + $0x50] sm:$0xff]
    %v473 = vld [vmem:[#allocation8 + $0x58] sm:$0xff]
    %v474 = vld [vmem:[#allocation8 + $0x60] sm:$0xff]
    %v475 = vld [vmem:[#allocation8 + $0x68] sm:$0xff]
    %v476 = vld [vmem:[#allocation8 + $0x70] sm:$0xff]
    %v477 = vld [vmem:[#allocation8 + $0x78] sm:$0xff]
    %v478 = vld [vmem:[#allocation8 + $0x80] sm:$0xff]
    %v479 = vld [vmem:[#allocation8 + $0x88] sm:$0xff]
    %v480 = vld [vmem:[#allocation8 + $0x90] sm:$0xff]
    %v481 = vld [vmem:[#allocation8 + $0x98] sm:$0xff]
    %v482 = vld [vmem:[#allocation8 + $0xa0] sm:$0xff]
    %v483 = vld [vmem:[#allocation8 + $0xa8] sm:$0xff]
    %v484 = vld [vmem:[#allocation8 + $0xb0] sm:$0xff]
    %v485 = vld [vmem:[#allocation8 + $0xb8] sm:$0xff]
    %v486 = vld [vmem:[#allocation8 + $0xc0] sm:$0xff]
    %v487 = vld [vmem:[#allocation8 + $0xc8] sm:$0xff]
    %v488 = vld [vmem:[#allocation8 + $0xd0] sm:$0xff]
    %v489 = vld [vmem:[#allocation8 + $0xd8] sm:$0xff]
    %v490 = vld [vmem:[#allocation8 + $0xe0] sm:$0xff]
    %v491 = vld [vmem:[#allocation8 + $0xe8] sm:$0xff]
    %v492 = vld [vmem:[#allocation8 + $0xf0] sm:$0xff]
    %v493 = vld [vmem:[#allocation8 + $0xf8] sm:$0xff]
    %v526 = vunpack.c.l.b16 %v462
    %v527 = vunpack.c.h.b16 %v462
    %v528 = vunpack.c.l.b16 %v463
    %v529 = vunpack.c.h.b16 %v463
    %v530 = vunpack.c.l.b16 %v464
    %v531 = vunpack.c.h.b16 %v464
    %v532 = vunpack.c.l.b16 %v465
    %v533 = vunpack.c.h.b16 %v465
    %v534 = vunpack.c.l.b16 %v466
    %v535 = vunpack.c.h.b16 %v466
    %v536 = vunpack.c.l.b16 %v467
    %v537 = vunpack.c.h.b16 %v467
    %v538 = vunpack.c.l.b16 %v468
    %v539 = vunpack.c.h.b16 %v468
    %v540 = vunpack.c.l.b16 %v469
    %v541 = vunpack.c.h.b16 %v469
    %v542 = vunpack.c.l.b16 %v470
    %v543 = vunpack.c.h.b16 %v470
    %v544 = vunpack.c.l.b16 %v471
    %v545 = vunpack.c.h.b16 %v471
    %v546 = vunpack.c.l.b16 %v472
    %v547 = vunpack.c.h.b16 %v472
    %v548 = vunpack.c.l.b16 %v473
    %v549 = vunpack.c.h.b16 %v473
    %v550 = vunpack.c.l.b16 %v474
    %v551 = vunpack.c.h.b16 %v474
    %v552 = vunpack.c.l.b16 %v475
    %v553 = vunpack.c.h.b16 %v475
    %v554 = vunpack.c.l.b16 %v476
    %v555 = vunpack.c.h.b16 %v476
    %v556 = vunpack.c.l.b16 %v477
    %v557 = vunpack.c.h.b16 %v477
    %v558 = vunpack.c.l.b16 %v478
    %v559 = vunpack.c.h.b16 %v478
    %v560 = vunpack.c.l.b16 %v479
    %v561 = vunpack.c.h.b16 %v479
    %v562 = vunpack.c.l.b16 %v480
    %v563 = vunpack.c.h.b16 %v480
    %v564 = vunpack.c.l.b16 %v481
    %v565 = vunpack.c.h.b16 %v481
    %v566 = vunpack.c.l.b16 %v482
    %v567 = vunpack.c.h.b16 %v482
    %v568 = vunpack.c.l.b16 %v483
    %v569 = vunpack.c.h.b16 %v483
    %v570 = vunpack.c.l.b16 %v484
    %v571 = vunpack.c.h.b16 %v484
    %v572 = vunpack.c.l.b16 %v485
    %v573 = vunpack.c.h.b16 %v485
    %v574 = vunpack.c.l.b16 %v486
    %v575 = vunpack.c.h.b16 %v486
    %v576 = vunpack.c.l.b16 %v487
    %v577 = vunpack.c.h.b16 %v487
    %v578 = vunpack.c.l.b16 %v488
    %v579 = vunpack.c.h.b16 %v488
    %v580 = vunpack.c.l.b16 %v489
    %v581 = vunpack.c.h.b16 %v489
    %v582 = vunpack.c.l.b16 %v490
    %v583 = vunpack.c.h.b16 %v490
    %v584 = vunpack.c.l.b16 %v491
    %v585 = vunpack.c.h.b16 %v491
    %v586 = vunpack.c.l.b16 %v492
    %v587 = vunpack.c.h.b16 %v492
    %v588 = vunpack.c.l.b16 %v493
    %v589 = vunpack.c.h.b16 %v493
    %v590 = vpack.c.b16 %v530, %v526
    %v591 = vpack.c.b16 %v531, %v527
    %v592 = vpack.c.b16 %v532, %v528
    %v593 = vpack.c.b16 %v533, %v529
    %v594 = vpack.c.b16 %v538, %v534
    %v595 = vpack.c.b16 %v539, %v535
    %v596 = vpack.c.b16 %v540, %v536
    %v597 = vpack.c.b16 %v541, %v537
    %v598 = vpack.c.b16 %v546, %v542
    %v599 = vpack.c.b16 %v547, %v543
    %v600 = vpack.c.b16 %v548, %v544
    %v601 = vpack.c.b16 %v549, %v545
    %v602 = vpack.c.b16 %v554, %v550
    %v603 = vpack.c.b16 %v555, %v551
    %v604 = vpack.c.b16 %v556, %v552
    %v605 = vpack.c.b16 %v557, %v553
    %v606 = vpack.c.b16 %v562, %v558
    %v607 = vpack.c.b16 %v563, %v559
    %v608 = vpack.c.b16 %v564, %v560
    %v609 = vpack.c.b16 %v565, %v561
    %v610 = vpack.c.b16 %v570, %v566
    %v611 = vpack.c.b16 %v571, %v567
    %v612 = vpack.c.b16 %v572, %v568
    %v613 = vpack.c.b16 %v573, %v569
    %v614 = vpack.c.b16 %v578, %v574
    %v615 = vpack.c.b16 %v579, %v575
    %v616 = vpack.c.b16 %v580, %v576
    %v617 = vpack.c.b16 %v581, %v577
    %v618 = vpack.c.b16 %v586, %v582
    %v619 = vpack.c.b16 %v587, %v583
    %v620 = vpack.c.b16 %v588, %v584
    %v621 = vpack.c.b16 %v589, %v585
    %654 = vmatpush.bf16.msra.mxu0 %v618
    %655 = vmatpush.bf16.msra.mxu0 %v614
    %656 = vmatpush.bf16.msra.mxu0 %v610
    %657 = vmatpush.bf16.msra.mxu0 %v606
    %658 = vmatpush.bf16.msra.mxu0 %v602
    %659 = vmatpush.bf16.msra.mxu0 %v598
    %660 = vmatpush.bf16.msra.mxu0 %v594
    %661 = vmatpush.bf16.msra.mxu0 %v590
    %662 = vmatmul.bf16.gmra.mxu0 0
    %v663 = vpop.f32.mrf.mxu0
    %v664 = vadd.f32 0.0, %v663
    %v665 = vpop.f32.mrf.mxu0
    %666 = vdwg.mxu0
    %667 = vmatpush.bf16.msra.mxu0 %v619
    %668 = vmatpush.bf16.msra.mxu0 %v615
    %669 = vmatpush.bf16.msra.mxu0 %v611
    %670 = vmatpush.bf16.msra.mxu0 %v607
    %671 = vmatpush.bf16.msra.mxu0 %v603
    %672 = vmatpush.bf16.msra.mxu0 %v599
    %673 = vmatpush.bf16.msra.mxu0 %v595
    %674 = vmatpush.bf16.msra.mxu0 %v591
    %675 = vmatmul.bf16.gmra.mxu0 0
    %v676 = vpop.f32.mrf.mxu0
    %v677 = vadd.f32 0.0, %v676
    %v678 = vpop.f32.mrf.mxu0
    %679 = vdwg.mxu0
    %680 = vmatpush.bf16.msra.mxu0 %v620
    %681 = vmatpush.bf16.msra.mxu0 %v616
    %682 = vmatpush.bf16.msra.mxu0 %v612
    %683 = vmatpush.bf16.msra.mxu0 %v608
    %684 = vmatpush.bf16.msra.mxu0 %v604
    %685 = vmatpush.bf16.msra.mxu0 %v600
    %686 = vmatpush.bf16.msra.mxu0 %v596
    %687 = vmatpush.bf16.msra.mxu0 %v592
    %688 = vmatmul.bf16.gmra.mxu0 0
    %v689 = vpop.f32.mrf.mxu0
    %v690 = vadd.f32 0.0, %v689
    %v691 = vpop.f32.mrf.mxu0
    %692 = vdwg.mxu0
    %693 = vmatpush.bf16.msra.mxu0 %v621
    %694 = vmatpush.bf16.msra.mxu0 %v617
    %695 = vmatpush.bf16.msra.mxu0 %v613
    %696 = vmatpush.bf16.msra.mxu0 %v609
    %697 = vmatpush.bf16.msra.mxu0 %v605
    %698 = vmatpush.bf16.msra.mxu0 %v601
    %699 = vmatpush.bf16.msra.mxu0 %v597
    %700 = vmatpush.bf16.msra.mxu0 %v593
    %701 = vmatmul.bf16.gmra.mxu0 0
    %v702 = vpop.f32.mrf.mxu0
    %v703 = vadd.f32 0.0, %v702
    %v704 = vpop.f32.mrf.mxu0
    %705 = vdwg.mxu0
    %v706 = vadd.f32 %v458, %v664
    %v707 = vadd.f32 %v459, %v677
    %v708 = vadd.f32 %v460, %v690
    %v709 = vadd.f32 %v461, %v703
    %v710 = vxor.u32 %v706, 2147483648
    %v711 = vxor.u32 %v707, 2147483648
    %v712 = vxor.u32 %v708, 2147483648
    %v713 = vmul.f32 %v710, 1.442695
    %v714 = vpow.pop %v713
    %v715 = vmul.f32 %v711, 1.442695
    %v716 = vpow.pop %v715
    %v717 = vmul.f32 %v712, 1.442695
    %v718 = vpow.pop %v717
    %v719 = vadd.f32 %v714, 1.0
    %v720 = vadd.f32 %v716, 1.0
    %v721 = vadd.f32 %v718, 1.0
    %v722 = vrcp.pop %v719
    %v723 = vmul.f32 %v719, %v722
    %v724 = vsub.f32 1.0, %v723
    %v725 = vmul.f32 %v722, %v724
    %v726 = vadd.f32 %v722, %v725
    %vm727 = vweird.f32 %v719
    %vm728 = vweird.f32 %v722
    %vm729 = vmor %vm727, %vm728
    %v730 = vsel %vm729, %v722, %v726
    %v731 = vand.u32 2147483647, %v719
    %vm732 = vcmp.eq.f32.partialorder %v731, 8.507059e+37
    %v733 = vand.u32 %v719, 2147483648
    %v734 = vor.u32 1.1754944e-38, %v733
    %v735 = vsel %vm732, %v734, %v730
    %v736 = vmul.f32 1.0, %v735
    %v737 = vrcp.pop %v720
    %v738 = vmul.f32 %v720, %v737
    %v739 = vsub.f32 1.0, %v738
    %v740 = vmul.f32 %v737, %v739
    %v741 = vadd.f32 %v737, %v740
    %vm742 = vweird.f32 %v720
    %vm743 = vweird.f32 %v737
    %vm744 = vmor %vm742, %vm743
    %v745 = vsel %vm744, %v737, %v741
    %v746 = vand.u32 2147483647, %v720
    %vm747 = vcmp.eq.f32.partialorder %v746, 8.507059e+37
    %v748 = vand.u32 %v720, 2147483648
    %v749 = vor.u32 1.1754944e-38, %v748
    %v750 = vsel %vm747, %v749, %v745
    %v751 = vmul.f32 1.0, %v750
    %v752 = vrcp.pop %v721
    %v753 = vmul.f32 %v721, %v752
    %v754 = vsub.f32 1.0, %v753
    %v755 = vmul.f32 %v752, %v754
    %v756 = vadd.f32 %v752, %v755
    %vm757 = vweird.f32 %v721
    %vm758 = vweird.f32 %v752
    %vm759 = vmor %vm757, %vm758
    %v760 = vsel %vm759, %v752, %v756
    %v761 = vand.u32 2147483647, %v721
    %vm762 = vcmp.eq.f32.partialorder %v761, 8.507059e+37
    %v763 = vand.u32 %v721, 2147483648
    %v764 = vor.u32 1.1754944e-38, %v763
    %v765 = vsel %vm762, %v764, %v760
    %v766 = vmul.f32 1.0, %v765
    %v767 = vtanh.pop %v709
    %v768 = vmul.f32 %v751, 0.0
    %v769 = vmul.f32 %v736, %v767
    %v770 = vadd.f32 %v768, %v769
    %v771 = vtanh.pop %v770
    %v772 = vmul.f32 %v766, %v771
    %v773 = vsel %vm457, 1, 0
    %774 = vset.pattern.permute.xlu0 0
    %775 = vperm.xlu0 %774, %v773
    %v776 = vpop.permute.xlu0 %775
    %vm777 = vcmp.eq.s32.totalorder %v776, 1
    %v778 = vsel %vm777, %v772, 0.0
    %v779 = vsel %vm777, %v770, 0.0
    %v780 = vld [vmem:[#allocation2 + $0x20] sm:$0xff]
    %v781 = vld [vmem:[#allocation2 + $0x28] sm:$0xff]
    %v782 = vld [vmem:[#allocation2 + $0x30] sm:$0xff]
    %v783 = vld [vmem:[#allocation2 + $0x38] sm:$0xff]
    %v784 = vpack.c.bf16 %v778, %v778
    %785 = vmatpush.bf16.msra.mxu0 %v618
    %786 = vmatpush.bf16.msra.mxu0 %v614
    %787 = vmatpush.bf16.msra.mxu0 %v610
    %788 = vmatpush.bf16.msra.mxu0 %v606
    %789 = vmatpush.bf16.msra.mxu0 %v602
    %790 = vmatpush.bf16.msra.mxu0 %v598
    %791 = vmatpush.bf16.msra.mxu0 %v594
    %792 = vmatpush.bf16.msra.mxu0 %v590
    %793 = vmatmul.bf16.gmra.mxu0 %v784
    %v794 = vpop.f32.mrf.mxu0
    %v795 = vadd.f32 0.0, %v794
    %v796 = vpop.f32.mrf.mxu0
    %797 = vdwg.mxu0
    %798 = vmatpush.bf16.msra.mxu0 %v619
    %799 = vmatpush.bf16.msra.mxu0 %v615
    %800 = vmatpush.bf16.msra.mxu0 %v611
    %801 = vmatpush.bf16.msra.mxu0 %v607
    %802 = vmatpush.bf16.msra.mxu0 %v603
    %803 = vmatpush.bf16.msra.mxu0 %v599
    %804 = vmatpush.bf16.msra.mxu0 %v595
    %805 = vmatpush.bf16.msra.mxu0 %v591
    %806 = vmatmul.bf16.gmra.mxu0 %v784
    %v807 = vpop.f32.mrf.mxu0
    %v808 = vadd.f32 0.0, %v807
    %v809 = vpop.f32.mrf.mxu0
    %810 = vdwg.mxu0
    %811 = vmatpush.bf16.msra.mxu0 %v620
    %812 = vmatpush.bf16.msra.mxu0 %v616
    %813 = vmatpush.bf16.msra.mxu0 %v612
    %814 = vmatpush.bf16.msra.mxu0 %v608
    %815 = vmatpush.bf16.msra.mxu0 %v604
    %816 = vmatpush.bf16.msra.mxu0 %v600
    %817 = vmatpush.bf16.msra.mxu0 %v596
    %818 = vmatpush.bf16.msra.mxu0 %v592
    %819 = vmatmul.bf16.gmra.mxu0 %v784
    %v820 = vpop.f32.mrf.mxu0
    %v821 = vadd.f32 0.0, %v820
    %v822 = vpop.f32.mrf.mxu0
    %823 = vdwg.mxu0
    %824 = vmatpush.bf16.msra.mxu0 %v621
    %825 = vmatpush.bf16.msra.mxu0 %v617
    %826 = vmatpush.bf16.msra.mxu0 %v613
    %827 = vmatpush.bf16.msra.mxu0 %v609
    %828 = vmatpush.bf16.msra.mxu0 %v605
    %829 = vmatpush.bf16.msra.mxu0 %v601
    %830 = vmatpush.bf16.msra.mxu0 %v597
    %831 = vmatpush.bf16.msra.mxu0 %v593
    %832 = vmatmul.bf16.gmra.mxu0 %v784
    %v833 = vpop.f32.mrf.mxu0
    %v834 = vadd.f32 0.0, %v833
    %v835 = vpop.f32.mrf.mxu0
    %836 = vdwg.mxu0
    %v837 = vadd.f32 %v780, %v795
    %v838 = vadd.f32 %v781, %v808
    %v839 = vadd.f32 %v782, %v821
    %v840 = vadd.f32 %v783, %v834
    %v841 = vxor.u32 %v837, 2147483648
    %v842 = vxor.u32 %v838, 2147483648
    %v843 = vxor.u32 %v839, 2147483648
    %v844 = vmul.f32 %v841, 1.442695
    %v845 = vpow.pop %v844
    %v846 = vmul.f32 %v842, 1.442695
    %v847 = vpow.pop %v846
    %v848 = vmul.f32 %v843, 1.442695
    %v849 = vpow.pop %v848
    %v850 = vadd.f32 %v845, 1.0
    %v851 = vadd.f32 %v847, 1.0
    %v852 = vadd.f32 %v849, 1.0
    %v853 = vrcp.pop %v850
    %v854 = vmul.f32 %v850, %v853
    %v855 = vsub.f32 1.0, %v854
    %v856 = vmul.f32 %v853, %v855
    %v857 = vadd.f32 %v853, %v856
    %vm858 = vweird.f32 %v850
    %vm859 = vweird.f32 %v853
    %vm860 = vmor %vm858, %vm859
    %v861 = vsel %vm860, %v853, %v857
    %v862 = vand.u32 2147483647, %v850
    %vm863 = vcmp.eq.f32.partialorder %v862, 8.507059e+37
    %v864 = vand.u32 %v850, 2147483648
    %v865 = vor.u32 1.1754944e-38, %v864
    %v866 = vsel %vm863, %v865, %v861
    %v867 = vmul.f32 1.0, %v866
    %v868 = vrcp.pop %v851
    %v869 = vmul.f32 %v851, %v868
    %v870 = vsub.f32 1.0, %v869
    %v871 = vmul.f32 %v868, %v870
    %v872 = vadd.f32 %v868, %v871
    %vm873 = vweird.f32 %v851
    %vm874 = vweird.f32 %v868
    %vm875 = vmor %vm873, %vm874
    %v876 = vsel %vm875, %v868, %v872
    %v877 = vand.u32 2147483647, %v851
    %vm878 = vcmp.eq.f32.partialorder %v877, 8.507059e+37
    %v879 = vand.u32 %v851, 2147483648
    %v880 = vor.u32 1.1754944e-38, %v879
    %v881 = vsel %vm878, %v880, %v876
    %v882 = vmul.f32 1.0, %v881
    %v883 = vrcp.pop %v852
    %v884 = vmul.f32 %v852, %v883
    %v885 = vsub.f32 1.0, %v884
    %v886 = vmul.f32 %v883, %v885
    %v887 = vadd.f32 %v883, %v886
    %vm888 = vweird.f32 %v852
    %vm889 = vweird.f32 %v883
    %vm890 = vmor %vm888, %vm889
    %v891 = vsel %vm890, %v883, %v887
    %v892 = vand.u32 2147483647, %v852
    %vm893 = vcmp.eq.f32.partialorder %v892, 8.507059e+37
    %v894 = vand.u32 %v852, 2147483648
    %v895 = vor.u32 1.1754944e-38, %v894
    %v896 = vsel %vm893, %v895, %v891
    %v897 = vmul.f32 1.0, %v896
    %v898 = vtanh.pop %v840
    %v899 = vmul.f32 %v882, %v779
    %v900 = vmul.f32 %v867, %v898
    %v901 = vadd.f32 %v899, %v900
    %v902 = vtanh.pop %v901
    %v903 = vmul.f32 %v897, %v902
    %904 = vset.pattern.permute.xlu0 1
    %905 = vperm.xlu0 %904, %v773
    %v906 = vpop.permute.xlu0 %905
    %vm907 = vcmp.eq.s32.totalorder %v906, 1
    %v908 = vsel %vm907, %v903, %v778
    %v909 = vsel %vm907, %v901, %v779
    %v910 = vld [vmem:[#allocation2 + $0x40] sm:$0xff]
    %v911 = vld [vmem:[#allocation2 + $0x48] sm:$0xff]
    %v912 = vld [vmem:[#allocation2 + $0x50] sm:$0xff]
    %v913 = vld [vmem:[#allocation2 + $0x58] sm:$0xff]
    %v914 = vpack.c.bf16 %v908, %v908
    %915 = vmatpush.bf16.msra.mxu0 %v618
    %916 = vmatpush.bf16.msra.mxu0 %v614
    %917 = vmatpush.bf16.msra.mxu0 %v610
    %918 = vmatpush.bf16.msra.mxu0 %v606
    %919 = vmatpush.bf16.msra.mxu0 %v602
    %920 = vmatpush.bf16.msra.mxu0 %v598
    %921 = vmatpush.bf16.msra.mxu0 %v594
    %922 = vmatpush.bf16.msra.mxu0 %v590
    %923 = vmatmul.bf16.gmra.mxu0 %v914
    %v924 = vpop.f32.mrf.mxu0
    %v925 = vadd.f32 0.0, %v924
    %v926 = vpop.f32.mrf.mxu0
    %927 = vdwg.mxu0
    %928 = vmatpush.bf16.msra.mxu0 %v619
    %929 = vmatpush.bf16.msra.mxu0 %v615
    %930 = vmatpush.bf16.msra.mxu0 %v611
    %931 = vmatpush.bf16.msra.mxu0 %v607
    %932 = vmatpush.bf16.msra.mxu0 %v603
    %933 = vmatpush.bf16.msra.mxu0 %v599
    %934 = vmatpush.bf16.msra.mxu0 %v595
    %935 = vmatpush.bf16.msra.mxu0 %v591
    %936 = vmatmul.bf16.gmra.mxu0 %v914
    %v937 = vpop.f32.mrf.mxu0
    %v938 = vadd.f32 0.0, %v937
    %v939 = vpop.f32.mrf.mxu0
    %940 = vdwg.mxu0
    %941 = vmatpush.bf16.msra.mxu0 %v620
    %942 = vmatpush.bf16.msra.mxu0 %v616
    %943 = vmatpush.bf16.msra.mxu0 %v612
    %944 = vmatpush.bf16.msra.mxu0 %v608
    %945 = vmatpush.bf16.msra.mxu0 %v604
    %946 = vmatpush.bf16.msra.mxu0 %v600
    %947 = vmatpush.bf16.msra.mxu0 %v596
    %948 = vmatpush.bf16.msra.mxu0 %v592
    %949 = vmatmul.bf16.gmra.mxu0 %v914
    %v950 = vpop.f32.mrf.mxu0
    %v951 = vadd.f32 0.0, %v950
    %v952 = vpop.f32.mrf.mxu0
    %953 = vdwg.mxu0
    %954 = vmatpush.bf16.msra.mxu0 %v621
    %955 = vmatpush.bf16.msra.mxu0 %v617
    %956 = vmatpush.bf16.msra.mxu0 %v613
    %957 = vmatpush.bf16.msra.mxu0 %v609
    %958 = vmatpush.bf16.msra.mxu0 %v605
    %959 = vmatpush.bf16.msra.mxu0 %v601
    %960 = vmatpush.bf16.msra.mxu0 %v597
    %961 = vmatpush.bf16.msra.mxu0 %v593
    %962 = vmatmul.bf16.gmra.mxu0 %v914
    %v963 = vpop.f32.mrf.mxu0
    %v964 = vadd.f32 0.0, %v963
    %v965 = vpop.f32.mrf.mxu0
    %966 = vdwg.mxu0
    %v967 = vadd.f32 %v910, %v925
    %v968 = vadd.f32 %v911, %v938
    %v969 = vadd.f32 %v912, %v951
    %v970 = vadd.f32 %v913, %v964
    %v971 = vxor.u32 %v967, 2147483648
    %v972 = vxor.u32 %v968, 2147483648
    %v973 = vxor.u32 %v969, 2147483648
    %v974 = vmul.f32 %v971, 1.442695
    %v975 = vpow.pop %v974
    %v976 = vmul.f32 %v972, 1.442695
    %v977 = vpow.pop %v976
    %v978 = vmul.f32 %v973, 1.442695
    %v979 = vpow.pop %v978
    %v980 = vadd.f32 %v975, 1.0
    %v981 = vadd.f32 %v977, 1.0
    %v982 = vadd.f32 %v979, 1.0
    %v983 = vrcp.pop %v980
    %v984 = vmul.f32 %v980, %v983
    %v985 = vsub.f32 1.0, %v984
    %v986 = vmul.f32 %v983, %v985
    %v987 = vadd.f32 %v983, %v986
    %vm988 = vweird.f32 %v980
    %vm989 = vweird.f32 %v983
    %vm990 = vmor %vm988, %vm989
    %v991 = vsel %vm990, %v983, %v987
    %v992 = vand.u32 2147483647, %v980
    %vm993 = vcmp.eq.f32.partialorder %v992, 8.507059e+37
    %v994 = vand.u32 %v980, 2147483648
    %v995 = vor.u32 1.1754944e-38, %v994
    %v996 = vsel %vm993, %v995, %v991
    %v997 = vmul.f32 1.0, %v996
    %v998 = vrcp.pop %v981
    %v999 = vmul.f32 %v981, %v998
    %v1000 = vsub.f32 1.0, %v999
    %v1001 = vmul.f32 %v998, %v1000
    %v1002 = vadd.f32 %v998, %v1001
    %vm1003 = vweird.f32 %v981
    %vm1004 = vweird.f32 %v998
    %vm1005 = vmor %vm1003, %vm1004
    %v1006 = vsel %vm1005, %v998, %v1002
    %v1007 = vand.u32 2147483647, %v981
    %vm1008 = vcmp.eq.f32.partialorder %v1007, 8.507059e+37
    %v1009 = vand.u32 %v981, 2147483648
    %v1010 = vor.u32 1.1754944e-38, %v1009
    %v1011 = vsel %vm1008, %v1010, %v1006
    %v1012 = vmul.f32 1.0, %v1011
    %v1013 = vrcp.pop %v982
    %v1014 = vmul.f32 %v982, %v1013
    %v1015 = vsub.f32 1.0, %v1014
    %v1016 = vmul.f32 %v1013, %v1015
    %v1017 = vadd.f32 %v1013, %v1016
    %vm1018 = vweird.f32 %v982
    %vm1019 = vweird.f32 %v1013
    %vm1020 = vmor %vm1018, %vm1019
    %v1021 = vsel %vm1020, %v1013, %v1017
    %v1022 = vand.u32 2147483647, %v982
    %vm1023 = vcmp.eq.f32.partialorder %v1022, 8.507059e+37
    %v1024 = vand.u32 %v982, 2147483648
    %v1025 = vor.u32 1.1754944e-38, %v1024
    %v1026 = vsel %vm1023, %v1025, %v1021
    %v1027 = vmul.f32 1.0, %v1026
    %v1028 = vtanh.pop %v970
    %v1029 = vmul.f32 %v1012, %v909
    %v1030 = vmul.f32 %v997, %v1028
    %v1031 = vadd.f32 %v1029, %v1030
    %v1032 = vtanh.pop %v1031
    %v1033 = vmul.f32 %v1027, %v1032
    %1034 = vset.pattern.permute.xlu0 2
    %1035 = vperm.xlu0 %1034, %v773
    %v1036 = vpop.permute.xlu0 %1035
    %vm1037 = vcmp.eq.s32.totalorder %v1036, 1
    %v1038 = vsel %vm1037, %v1033, %v908
    %v1039 = vsel %vm1037, %v1031, %v909
    %v1040 = vld [vmem:[#allocation2 + $0x60] sm:$0xff]
    %v1041 = vld [vmem:[#allocation2 + $0x68] sm:$0xff]
    %v1042 = vld [vmem:[#allocation2 + $0x70] sm:$0xff]
    %v1043 = vld [vmem:[#allocation2 + $0x78] sm:$0xff]
    %v1044 = vpack.c.bf16 %v1038, %v1038
    %1045 = vmatpush.bf16.msra.mxu0 %v618
    %1046 = vmatpush.bf16.msra.mxu0 %v614
    %1047 = vmatpush.bf16.msra.mxu0 %v610
    %1048 = vmatpush.bf16.msra.mxu0 %v606
    %1049 = vmatpush.bf16.msra.mxu0 %v602
    %1050 = vmatpush.bf16.msra.mxu0 %v598
    %1051 = vmatpush.bf16.msra.mxu0 %v594
    %1052 = vmatpush.bf16.msra.mxu0 %v590
    %1053 = vmatmul.bf16.gmra.mxu0 %v1044
    %v1054 = vpop.f32.mrf.mxu0
    %v1055 = vadd.f32 0.0, %v1054
    %v1056 = vpop.f32.mrf.mxu0
    %1057 = vdwg.mxu0
    %1058 = vmatpush.bf16.msra.mxu0 %v619
    %1059 = vmatpush.bf16.msra.mxu0 %v615
    %1060 = vmatpush.bf16.msra.mxu0 %v611
    %1061 = vmatpush.bf16.msra.mxu0 %v607
    %1062 = vmatpush.bf16.msra.mxu0 %v603
    %1063 = vmatpush.bf16.msra.mxu0 %v599
    %1064 = vmatpush.bf16.msra.mxu0 %v595
    %1065 = vmatpush.bf16.msra.mxu0 %v591
    %1066 = vmatmul.bf16.gmra.mxu0 %v1044
    %v1067 = vpop.f32.mrf.mxu0
    %v1068 = vadd.f32 0.0, %v1067
    %v1069 = vpop.f32.mrf.mxu0
    %1070 = vdwg.mxu0
    %1071 = vmatpush.bf16.msra.mxu0 %v620
    %1072 = vmatpush.bf16.msra.mxu0 %v616
    %1073 = vmatpush.bf16.msra.mxu0 %v612
    %1074 = vmatpush.bf16.msra.mxu0 %v608
    %1075 = vmatpush.bf16.msra.mxu0 %v604
    %1076 = vmatpush.bf16.msra.mxu0 %v600
    %1077 = vmatpush.bf16.msra.mxu0 %v596
    %1078 = vmatpush.bf16.msra.mxu0 %v592
    %1079 = vmatmul.bf16.gmra.mxu0 %v1044
    %v1080 = vpop.f32.mrf.mxu0
    %v1081 = vadd.f32 0.0, %v1080
    %v1082 = vpop.f32.mrf.mxu0
    %1083 = vdwg.mxu0
    %1084 = vmatpush.bf16.msra.mxu0 %v621
    %1085 = vmatpush.bf16.msra.mxu0 %v617
    %1086 = vmatpush.bf16.msra.mxu0 %v613
    %1087 = vmatpush.bf16.msra.mxu0 %v609
    %1088 = vmatpush.bf16.msra.mxu0 %v605
    %1089 = vmatpush.bf16.msra.mxu0 %v601
    %1090 = vmatpush.bf16.msra.mxu0 %v597
    %1091 = vmatpush.bf16.msra.mxu0 %v593
    %1092 = vmatmul.bf16.gmra.mxu0 %v1044
    %v1093 = vpop.f32.mrf.mxu0
    %v1094 = vadd.f32 0.0, %v1093
    %v1095 = vpop.f32.mrf.mxu0
    %1096 = vdwg.mxu0
    %v1097 = vadd.f32 %v1040, %v1055
    %v1098 = vadd.f32 %v1041, %v1068
    %v1099 = vadd.f32 %v1042, %v1081
    %v1100 = vadd.f32 %v1043, %v1094
    %v1101 = vxor.u32 %v1097, 2147483648
    %v1102 = vxor.u32 %v1098, 2147483648
    %v1103 = vxor.u32 %v1099, 2147483648
    %v1104 = vmul.f32 %v1101, 1.442695
    %v1105 = vpow.pop %v1104
    %v1106 = vmul.f32 %v1102, 1.442695
    %v1107 = vpow.pop %v1106
    %v1108 = vmul.f32 %v1103, 1.442695
    %v1109 = vpow.pop %v1108
    %v1110 = vadd.f32 %v1105, 1.0
    %v1111 = vadd.f32 %v1107, 1.0
    %v1112 = vadd.f32 %v1109, 1.0
    %v1113 = vrcp.pop %v1110
    %v1114 = vmul.f32 %v1110, %v1113
    %v1115 = vsub.f32 1.0, %v1114
    %v1116 = vmul.f32 %v1113, %v1115
    %v1117 = vadd.f32 %v1113, %v1116
    %vm1118 = vweird.f32 %v1110
    %vm1119 = vweird.f32 %v1113
    %vm1120 = vmor %vm1118, %vm1119
    %v1121 = vsel %vm1120, %v1113, %v1117
    %v1122 = vand.u32 2147483647, %v1110
    %vm1123 = vcmp.eq.f32.partialorder %v1122, 8.507059e+37
    %v1124 = vand.u32 %v1110, 2147483648
    %v1125 = vor.u32 1.1754944e-38, %v1124
    %v1126 = vsel %vm1123, %v1125, %v1121
    %v1127 = vmul.f32 1.0, %v1126
    %v1128 = vrcp.pop %v1111
    %v1129 = vmul.f32 %v1111, %v1128
    %v1130 = vsub.f32 1.0, %v1129
    %v1131 = vmul.f32 %v1128, %v1130
    %v1132 = vadd.f32 %v1128, %v1131
    %vm1133 = vweird.f32 %v1111
    %vm1134 = vweird.f32 %v1128
    %vm1135 = vmor %vm1133, %vm1134
    %v1136 = vsel %vm1135, %v1128, %v1132
    %v1137 = vand.u32 2147483647, %v1111
    %vm1138 = vcmp.eq.f32.partialorder %v1137, 8.507059e+37
    %v1139 = vand.u32 %v1111, 2147483648
    %v1140 = vor.u32 1.1754944e-38, %v1139
    %v1141 = vsel %vm1138, %v1140, %v1136
    %v1142 = vmul.f32 1.0, %v1141
    %v1143 = vrcp.pop %v1112
    %v1144 = vmul.f32 %v1112, %v1143
    %v1145 = vsub.f32 1.0, %v1144
    %v1146 = vmul.f32 %v1143, %v1145
    %v1147 = vadd.f32 %v1143, %v1146
    %vm1148 = vweird.f32 %v1112
    %vm1149 = vweird.f32 %v1143
    %vm1150 = vmor %vm1148, %vm1149
    %v1151 = vsel %vm1150, %v1143, %v1147
    %v1152 = vand.u32 2147483647, %v1112
    %vm1153 = vcmp.eq.f32.partialorder %v1152, 8.507059e+37
    %v1154 = vand.u32 %v1112, 2147483648
    %v1155 = vor.u32 1.1754944e-38, %v1154
    %v1156 = vsel %vm1153, %v1155, %v1151
    %v1157 = vmul.f32 1.0, %v1156
    %v1158 = vtanh.pop %v1100
    %v1159 = vmul.f32 %v1142, %v1039
    %v1160 = vmul.f32 %v1127, %v1158
    %v1161 = vadd.f32 %v1159, %v1160
    %v1162 = vtanh.pop %v1161
    %v1163 = vmul.f32 %v1157, %v1162
    %1164 = vset.pattern.permute.xlu0 3
    %1165 = vperm.xlu0 %1164, %v773
    %v1166 = vpop.permute.xlu0 %1165
    %vm1167 = vcmp.eq.s32.totalorder %v1166, 1
    %v1168 = vsel %vm1167, %v1163, %v1038
    %v1169 = vsel %vm1167, %v1161, %v1039
    %v1170 = vld [vmem:[#allocation2 + $0x80] sm:$0xff]
    %v1171 = vld [vmem:[#allocation2 + $0x88] sm:$0xff]
    %v1172 = vld [vmem:[#allocation2 + $0x90] sm:$0xff]
    %v1173 = vld [vmem:[#allocation2 + $0x98] sm:$0xff]
    %v1174 = vpack.c.bf16 %v1168, %v1168
    %1175 = vmatpush.bf16.msra.mxu0 %v618
    %1176 = vmatpush.bf16.msra.mxu0 %v614
    %1177 = vmatpush.bf16.msra.mxu0 %v610
    %1178 = vmatpush.bf16.msra.mxu0 %v606
    %1179 = vmatpush.bf16.msra.mxu0 %v602
    %1180 = vmatpush.bf16.msra.mxu0 %v598
    %1181 = vmatpush.bf16.msra.mxu0 %v594
    %1182 = vmatpush.bf16.msra.mxu0 %v590
    %1183 = vmatmul.bf16.gmra.mxu0 %v1174
    %v1184 = vpop.f32.mrf.mxu0
    %v1185 = vadd.f32 0.0, %v1184
    %v1186 = vpop.f32.mrf.mxu0
    %1187 = vdwg.mxu0
    %1188 = vmatpush.bf16.msra.mxu0 %v619
    %1189 = vmatpush.bf16.msra.mxu0 %v615
    %1190 = vmatpush.bf16.msra.mxu0 %v611
    %1191 = vmatpush.bf16.msra.mxu0 %v607
    %1192 = vmatpush.bf16.msra.mxu0 %v603
    %1193 = vmatpush.bf16.msra.mxu0 %v599
    %1194 = vmatpush.bf16.msra.mxu0 %v595
    %1195 = vmatpush.bf16.msra.mxu0 %v591
    %1196 = vmatmul.bf16.gmra.mxu0 %v1174
    %v1197 = vpop.f32.mrf.mxu0
    %v1198 = vadd.f32 0.0, %v1197
    %v1199 = vpop.f32.mrf.mxu0
    %1200 = vdwg.mxu0
    %1201 = vmatpush.bf16.msra.mxu0 %v620
    %1202 = vmatpush.bf16.msra.mxu0 %v616
    %1203 = vmatpush.bf16.msra.mxu0 %v612
    %1204 = vmatpush.bf16.msra.mxu0 %v608
    %1205 = vmatpush.bf16.msra.mxu0 %v604
    %1206 = vmatpush.bf16.msra.mxu0 %v600
    %1207 = vmatpush.bf16.msra.mxu0 %v596
    %1208 = vmatpush.bf16.msra.mxu0 %v592
    %1209 = vmatmul.bf16.gmra.mxu0 %v1174
    %v1210 = vpop.f32.mrf.mxu0
    %v1211 = vadd.f32 0.0, %v1210
    %v1212 = vpop.f32.mrf.mxu0
    %1213 = vdwg.mxu0
    %1214 = vmatpush.bf16.msra.mxu0 %v621
    %1215 = vmatpush.bf16.msra.mxu0 %v617
    %1216 = vmatpush.bf16.msra.mxu0 %v613
    %1217 = vmatpush.bf16.msra.mxu0 %v609
    %1218 = vmatpush.bf16.msra.mxu0 %v605
    %1219 = vmatpush.bf16.msra.mxu0 %v601
    %1220 = vmatpush.bf16.msra.mxu0 %v597
    %1221 = vmatpush.bf16.msra.mxu0 %v593
    %1222 = vmatmul.bf16.gmra.mxu0 %v1174
    %v1223 = vpop.f32.mrf.mxu0
    %v1224 = vadd.f32 0.0, %v1223
    %v1225 = vpop.f32.mrf.mxu0
    %1226 = vdwg.mxu0
    %v1227 = vadd.f32 %v1170, %v1185
    %v1228 = vadd.f32 %v1171, %v1198
    %v1229 = vadd.f32 %v1172, %v1211
    %v1230 = vadd.f32 %v1173, %v1224
    %v1231 = vxor.u32 %v1227, 2147483648
    %v1232 = vxor.u32 %v1228, 2147483648
    %v1233 = vxor.u32 %v1229, 2147483648
    %v1234 = vmul.f32 %v1231, 1.442695
    %v1235 = vpow.pop %v1234
    %v1236 = vmul.f32 %v1232, 1.442695
    %v1237 = vpow.pop %v1236
    %v1238 = vmul.f32 %v1233, 1.442695
    %v1239 = vpow.pop %v1238
    %v1240 = vadd.f32 %v1235, 1.0
    %v1241 = vadd.f32 %v1237, 1.0
    %v1242 = vadd.f32 %v1239, 1.0
    %v1243 = vrcp.pop %v1240
    %v1244 = vmul.f32 %v1240, %v1243
    %v1245 = vsub.f32 1.0, %v1244
    %v1246 = vmul.f32 %v1243, %v1245
    %v1247 = vadd.f32 %v1243, %v1246
    %vm1248 = vweird.f32 %v1240
    %vm1249 = vweird.f32 %v1243
    %vm1250 = vmor %vm1248, %vm1249
    %v1251 = vsel %vm1250, %v1243, %v1247
    %v1252 = vand.u32 2147483647, %v1240
    %vm1253 = vcmp.eq.f32.partialorder %v1252, 8.507059e+37
    %v1254 = vand.u32 %v1240, 2147483648
    %v1255 = vor.u32 1.1754944e-38, %v1254
    %v1256 = vsel %vm1253, %v1255, %v1251
    %v1257 = vmul.f32 1.0, %v1256
    %v1258 = vrcp.pop %v1241
    %v1259 = vmul.f32 %v1241, %v1258
    %v1260 = vsub.f32 1.0, %v1259
    %v1261 = vmul.f32 %v1258, %v1260
    %v1262 = vadd.f32 %v1258, %v1261
    %vm1263 = vweird.f32 %v1241
    %vm1264 = vweird.f32 %v1258
    %vm1265 = vmor %vm1263, %vm1264
    %v1266 = vsel %vm1265, %v1258, %v1262
    %v1267 = vand.u32 2147483647, %v1241
    %vm1268 = vcmp.eq.f32.partialorder %v1267, 8.507059e+37
    %v1269 = vand.u32 %v1241, 2147483648
    %v1270 = vor.u32 1.1754944e-38, %v1269
    %v1271 = vsel %vm1268, %v1270, %v1266
    %v1272 = vmul.f32 1.0, %v1271
    %v1273 = vrcp.pop %v1242
    %v1274 = vmul.f32 %v1242, %v1273
    %v1275 = vsub.f32 1.0, %v1274
    %v1276 = vmul.f32 %v1273, %v1275
    %v1277 = vadd.f32 %v1273, %v1276
    %vm1278 = vweird.f32 %v1242
    %vm1279 = vweird.f32 %v1273
    %vm1280 = vmor %vm1278, %vm1279
    %v1281 = vsel %vm1280, %v1273, %v1277
    %v1282 = vand.u32 2147483647, %v1242
    %vm1283 = vcmp.eq.f32.partialorder %v1282, 8.507059e+37
    %v1284 = vand.u32 %v1242, 2147483648
    %v1285 = vor.u32 1.1754944e-38, %v1284
    %v1286 = vsel %vm1283, %v1285, %v1281
    %v1287 = vmul.f32 1.0, %v1286
    %v1288 = vtanh.pop %v1230
    %v1289 = vmul.f32 %v1272, %v1169
    %v1290 = vmul.f32 %v1257, %v1288
    %v1291 = vadd.f32 %v1289, %v1290
    %v1292 = vtanh.pop %v1291
    %v1293 = vmul.f32 %v1287, %v1292
    %1294 = vset.pattern.permute.xlu0 4
    %1295 = vperm.xlu0 %1294, %v773
    %v1296 = vpop.permute.xlu0 %1295
    %vm1297 = vcmp.eq.s32.totalorder %v1296, 1
    %v1298 = vsel %vm1297, %v1293, %v1168
    %v1299 = vsel %vm1297, %v1291, %v1169
    %v1300 = vld [vmem:[#allocation2 + $0xa0] sm:$0xff]
    %v1301 = vld [vmem:[#allocation2 + $0xa8] sm:$0xff]
    %v1302 = vld [vmem:[#allocation2 + $0xb0] sm:$0xff]
    %v1303 = vld [vmem:[#allocation2 + $0xb8] sm:$0xff]
    %v1304 = vpack.c.bf16 %v1298, %v1298
    %1305 = vmatpush.bf16.msra.mxu0 %v618
    %1306 = vmatpush.bf16.msra.mxu0 %v614
    %1307 = vmatpush.bf16.msra.mxu0 %v610
    %1308 = vmatpush.bf16.msra.mxu0 %v606
    %1309 = vmatpush.bf16.msra.mxu0 %v602
    %1310 = vmatpush.bf16.msra.mxu0 %v598
    %1311 = vmatpush.bf16.msra.mxu0 %v594
    %1312 = vmatpush.bf16.msra.mxu0 %v590
    %1313 = vmatmul.bf16.gmra.mxu0 %v1304
    %v1314 = vpop.f32.mrf.mxu0
    %v1315 = vadd.f32 0.0, %v1314
    %v1316 = vpop.f32.mrf.mxu0
    %1317 = vdwg.mxu0
    %1318 = vmatpush.bf16.msra.mxu0 %v619
    %1319 = vmatpush.bf16.msra.mxu0 %v615
    %1320 = vmatpush.bf16.msra.mxu0 %v611
    %1321 = vmatpush.bf16.msra.mxu0 %v607
    %1322 = vmatpush.bf16.msra.mxu0 %v603
    %1323 = vmatpush.bf16.msra.mxu0 %v599
    %1324 = vmatpush.bf16.msra.mxu0 %v595
    %1325 = vmatpush.bf16.msra.mxu0 %v591
    %1326 = vmatmul.bf16.gmra.mxu0 %v1304
    %v1327 = vpop.f32.mrf.mxu0
    %v1328 = vadd.f32 0.0, %v1327
    %v1329 = vpop.f32.mrf.mxu0
    %1330 = vdwg.mxu0
    %1331 = vmatpush.bf16.msra.mxu0 %v620
    %1332 = vmatpush.bf16.msra.mxu0 %v616
    %1333 = vmatpush.bf16.msra.mxu0 %v612
    %1334 = vmatpush.bf16.msra.mxu0 %v608
    %1335 = vmatpush.bf16.msra.mxu0 %v604
    %1336 = vmatpush.bf16.msra.mxu0 %v600
    %1337 = vmatpush.bf16.msra.mxu0 %v596
    %1338 = vmatpush.bf16.msra.mxu0 %v592
    %1339 = vmatmul.bf16.gmra.mxu0 %v1304
    %v1340 = vpop.f32.mrf.mxu0
    %v1341 = vadd.f32 0.0, %v1340
    %v1342 = vpop.f32.mrf.mxu0
    %1343 = vdwg.mxu0
    %1344 = vmatpush.bf16.msra.mxu0 %v621
    %1345 = vmatpush.bf16.msra.mxu0 %v617
    %1346 = vmatpush.bf16.msra.mxu0 %v613
    %1347 = vmatpush.bf16.msra.mxu0 %v609
    %1348 = vmatpush.bf16.msra.mxu0 %v605
    %1349 = vmatpush.bf16.msra.mxu0 %v601
    %1350 = vmatpush.bf16.msra.mxu0 %v597
    %1351 = vmatpush.bf16.msra.mxu0 %v593
    %1352 = vmatmul.bf16.gmra.mxu0 %v1304
    %v1353 = vpop.f32.mrf.mxu0
    %v1354 = vadd.f32 0.0, %v1353
    %v1355 = vpop.f32.mrf.mxu0
    %1356 = vdwg.mxu0
    %v1357 = vadd.f32 %v1300, %v1315
    %v1358 = vadd.f32 %v1301, %v1328
    %v1359 = vadd.f32 %v1302, %v1341
    %v1360 = vadd.f32 %v1303, %v1354
    %v1361 = vxor.u32 %v1357, 2147483648
    %v1362 = vxor.u32 %v1358, 2147483648
    %v1363 = vxor.u32 %v1359, 2147483648
    %v1364 = vmul.f32 %v1361, 1.442695
    %v1365 = vpow.pop %v1364
    %v1366 = vmul.f32 %v1362, 1.442695
    %v1367 = vpow.pop %v1366
    %v1368 = vmul.f32 %v1363, 1.442695
    %v1369 = vpow.pop %v1368
    %v1370 = vadd.f32 %v1365, 1.0
    %v1371 = vadd.f32 %v1367, 1.0
    %v1372 = vadd.f32 %v1369, 1.0
    %v1373 = vrcp.pop %v1370
    %v1374 = vmul.f32 %v1370, %v1373
    %v1375 = vsub.f32 1.0, %v1374
    %v1376 = vmul.f32 %v1373, %v1375
    %v1377 = vadd.f32 %v1373, %v1376
    %vm1378 = vweird.f32 %v1370
    %vm1379 = vweird.f32 %v1373
    %vm1380 = vmor %vm1378, %vm1379
    %v1381 = vsel %vm1380, %v1373, %v1377
    %v1382 = vand.u32 2147483647, %v1370
    %vm1383 = vcmp.eq.f32.partialorder %v1382, 8.507059e+37
    %v1384 = vand.u32 %v1370, 2147483648
    %v1385 = vor.u32 1.1754944e-38, %v1384
    %v1386 = vsel %vm1383, %v1385, %v1381
    %v1387 = vmul.f32 1.0, %v1386
    %v1388 = vrcp.pop %v1371
    %v1389 = vmul.f32 %v1371, %v1388
    %v1390 = vsub.f32 1.0, %v1389
    %v1391 = vmul.f32 %v1388, %v1390
    %v1392 = vadd.f32 %v1388, %v1391
    %vm1393 = vweird.f32 %v1371
    %vm1394 = vweird.f32 %v1388
    %vm1395 = vmor %vm1393, %vm1394
    %v1396 = vsel %vm1395, %v1388, %v1392
    %v1397 = vand.u32 2147483647, %v1371
    %vm1398 = vcmp.eq.f32.partialorder %v1397, 8.507059e+37
    %v1399 = vand.u32 %v1371, 2147483648
    %v1400 = vor.u32 1.1754944e-38, %v1399
    %v1401 = vsel %vm1398, %v1400, %v1396
    %v1402 = vmul.f32 1.0, %v1401
    %v1403 = vrcp.pop %v1372
    %v1404 = vmul.f32 %v1372, %v1403
    %v1405 = vsub.f32 1.0, %v1404
    %v1406 = vmul.f32 %v1403, %v1405
    %v1407 = vadd.f32 %v1403, %v1406
    %vm1408 = vweird.f32 %v1372
    %vm1409 = vweird.f32 %v1403
    %vm1410 = vmor %vm1408, %vm1409
    %v1411 = vsel %vm1410, %v1403, %v1407
    %v1412 = vand.u32 2147483647, %v1372
    %vm1413 = vcmp.eq.f32.partialorder %v1412, 8.507059e+37
    %v1414 = vand.u32 %v1372, 2147483648
    %v1415 = vor.u32 1.1754944e-38, %v1414
    %v1416 = vsel %vm1413, %v1415, %v1411
    %v1417 = vmul.f32 1.0, %v1416
    %v1418 = vtanh.pop %v1360
    %v1419 = vmul.f32 %v1402, %v1299
    %v1420 = vmul.f32 %v1387, %v1418
    %v1421 = vadd.f32 %v1419, %v1420
    %v1422 = vtanh.pop %v1421
    %v1423 = vmul.f32 %v1417, %v1422
    %1424 = vset.pattern.permute.xlu0 5
    %1425 = vperm.xlu0 %1424, %v773
    %v1426 = vpop.permute.xlu0 %1425
    %vm1427 = vcmp.eq.s32.totalorder %v1426, 1
    %v1428 = vsel %vm1427, %v1423, %v1298
    %v1429 = vsel %vm1427, %v1421, %v1299
    %v1430 = vld [vmem:[#allocation2 + $0xc0] sm:$0xff]
    %v1431 = vld [vmem:[#allocation2 + $0xc8] sm:$0xff]
    %v1432 = vld [vmem:[#allocation2 + $0xd0] sm:$0xff]
    %v1433 = vld [vmem:[#allocation2 + $0xd8] sm:$0xff]
    %v1434 = vpack.c.bf16 %v1428, %v1428
    %1435 = vmatpush.bf16.msra.mxu0 %v618
    %1436 = vmatpush.bf16.msra.mxu0 %v614
    %1437 = vmatpush.bf16.msra.mxu0 %v610
    %1438 = vmatpush.bf16.msra.mxu0 %v606
    %1439 = vmatpush.bf16.msra.mxu0 %v602
    %1440 = vmatpush.bf16.msra.mxu0 %v598
    %1441 = vmatpush.bf16.msra.mxu0 %v594
    %1442 = vmatpush.bf16.msra.mxu0 %v590
    %1443 = vmatmul.bf16.gmra.mxu0 %v1434
    %v1444 = vpop.f32.mrf.mxu0
    %v1445 = vadd.f32 0.0, %v1444
    %v1446 = vpop.f32.mrf.mxu0
    %1447 = vdwg.mxu0
    %1448 = vmatpush.bf16.msra.mxu0 %v619
    %1449 = vmatpush.bf16.msra.mxu0 %v615
    %1450 = vmatpush.bf16.msra.mxu0 %v611
    %1451 = vmatpush.bf16.msra.mxu0 %v607
    %1452 = vmatpush.bf16.msra.mxu0 %v603
    %1453 = vmatpush.bf16.msra.mxu0 %v599
    %1454 = vmatpush.bf16.msra.mxu0 %v595
    %1455 = vmatpush.bf16.msra.mxu0 %v591
    %1456 = vmatmul.bf16.gmra.mxu0 %v1434
    %v1457 = vpop.f32.mrf.mxu0
    %v1458 = vadd.f32 0.0, %v1457
    %v1459 = vpop.f32.mrf.mxu0
    %1460 = vdwg.mxu0
    %1461 = vmatpush.bf16.msra.mxu0 %v620
    %1462 = vmatpush.bf16.msra.mxu0 %v616
    %1463 = vmatpush.bf16.msra.mxu0 %v612
    %1464 = vmatpush.bf16.msra.mxu0 %v608
    %1465 = vmatpush.bf16.msra.mxu0 %v604
    %1466 = vmatpush.bf16.msra.mxu0 %v600
    %1467 = vmatpush.bf16.msra.mxu0 %v596
    %1468 = vmatpush.bf16.msra.mxu0 %v592
    %1469 = vmatmul.bf16.gmra.mxu0 %v1434
    %v1470 = vpop.f32.mrf.mxu0
    %v1471 = vadd.f32 0.0, %v1470
    %v1472 = vpop.f32.mrf.mxu0
    %1473 = vdwg.mxu0
    %1474 = vmatpush.bf16.msra.mxu0 %v621
    %1475 = vmatpush.bf16.msra.mxu0 %v617
    %1476 = vmatpush.bf16.msra.mxu0 %v613
    %1477 = vmatpush.bf16.msra.mxu0 %v609
    %1478 = vmatpush.bf16.msra.mxu0 %v605
    %1479 = vmatpush.bf16.msra.mxu0 %v601
    %1480 = vmatpush.bf16.msra.mxu0 %v597
    %1481 = vmatpush.bf16.msra.mxu0 %v593
    %1482 = vmatmul.bf16.gmra.mxu0 %v1434
    %v1483 = vpop.f32.mrf.mxu0
    %v1484 = vadd.f32 0.0, %v1483
    %v1485 = vpop.f32.mrf.mxu0
    %1486 = vdwg.mxu0
    %v1487 = vadd.f32 %v1430, %v1445
    %v1488 = vadd.f32 %v1431, %v1458
    %v1489 = vadd.f32 %v1432, %v1471
    %v1490 = vadd.f32 %v1433, %v1484
    %v1491 = vxor.u32 %v1487, 2147483648
    %v1492 = vxor.u32 %v1488, 2147483648
    %v1493 = vxor.u32 %v1489, 2147483648
    %v1494 = vmul.f32 %v1491, 1.442695
    %v1495 = vpow.pop %v1494
    %v1496 = vmul.f32 %v1492, 1.442695
    %v1497 = vpow.pop %v1496
    %v1498 = vmul.f32 %v1493, 1.442695
    %v1499 = vpow.pop %v1498
    %v1500 = vadd.f32 %v1495, 1.0
    %v1501 = vadd.f32 %v1497, 1.0
    %v1502 = vadd.f32 %v1499, 1.0
    %v1503 = vrcp.pop %v1500
    %v1504 = vmul.f32 %v1500, %v1503
    %v1505 = vsub.f32 1.0, %v1504
    %v1506 = vmul.f32 %v1503, %v1505
    %v1507 = vadd.f32 %v1503, %v1506
    %vm1508 = vweird.f32 %v1500
    %vm1509 = vweird.f32 %v1503
    %vm1510 = vmor %vm1508, %vm1509
    %v1511 = vsel %vm1510, %v1503, %v1507
    %v1512 = vand.u32 2147483647, %v1500
    %vm1513 = vcmp.eq.f32.partialorder %v1512, 8.507059e+37
    %v1514 = vand.u32 %v1500, 2147483648
    %v1515 = vor.u32 1.1754944e-38, %v1514
    %v1516 = vsel %vm1513, %v1515, %v1511
    %v1517 = vmul.f32 1.0, %v1516
    %v1518 = vrcp.pop %v1501
    %v1519 = vmul.f32 %v1501, %v1518
    %v1520 = vsub.f32 1.0, %v1519
    %v1521 = vmul.f32 %v1518, %v1520
    %v1522 = vadd.f32 %v1518, %v1521
    %vm1523 = vweird.f32 %v1501
    %vm1524 = vweird.f32 %v1518
    %vm1525 = vmor %vm1523, %vm1524
    %v1526 = vsel %vm1525, %v1518, %v1522
    %v1527 = vand.u32 2147483647, %v1501
    %vm1528 = vcmp.eq.f32.partialorder %v1527, 8.507059e+37
    %v1529 = vand.u32 %v1501, 2147483648
    %v1530 = vor.u32 1.1754944e-38, %v1529
    %v1531 = vsel %vm1528, %v1530, %v1526
    %v1532 = vmul.f32 1.0, %v1531
    %v1533 = vrcp.pop %v1502
    %v1534 = vmul.f32 %v1502, %v1533
    %v1535 = vsub.f32 1.0, %v1534
    %v1536 = vmul.f32 %v1533, %v1535
    %v1537 = vadd.f32 %v1533, %v1536
    %vm1538 = vweird.f32 %v1502
    %vm1539 = vweird.f32 %v1533
    %vm1540 = vmor %vm1538, %vm1539
    %v1541 = vsel %vm1540, %v1533, %v1537
    %v1542 = vand.u32 2147483647, %v1502
    %vm1543 = vcmp.eq.f32.partialorder %v1542, 8.507059e+37
    %v1544 = vand.u32 %v1502, 2147483648
    %v1545 = vor.u32 1.1754944e-38, %v1544
    %v1546 = vsel %vm1543, %v1545, %v1541
    %v1547 = vmul.f32 1.0, %v1546
    %v1548 = vtanh.pop %v1490
    %v1549 = vmul.f32 %v1532, %v1429
    %v1550 = vmul.f32 %v1517, %v1548
    %v1551 = vadd.f32 %v1549, %v1550
    %v1552 = vtanh.pop %v1551
    %v1553 = vmul.f32 %v1547, %v1552
    %1554 = vset.pattern.permute.xlu0 6
    %1555 = vperm.xlu0 %1554, %v773
    %v1556 = vpop.permute.xlu0 %1555
    %vm1557 = vcmp.eq.s32.totalorder %v1556, 1
    %v1558 = vsel %vm1557, %v1553, %v1428
    %v1559 = vsel %vm1557, %v1551, %v1429
    %v1560 = vld [vmem:[#allocation2 + $0xe0] sm:$0xff]
    %v1561 = vld [vmem:[#allocation2 + $0xe8] sm:$0xff]
    %v1562 = vld [vmem:[#allocation2 + $0xf0] sm:$0xff]
    %v1563 = vld [vmem:[#allocation2 + $0xf8] sm:$0xff]
    %v1564 = vpack.c.bf16 %v1558, %v1558
    %1565 = vmatpush.bf16.msra.mxu0 %v618
    %1566 = vmatpush.bf16.msra.mxu0 %v614
    %1567 = vmatpush.bf16.msra.mxu0 %v610
    %1568 = vmatpush.bf16.msra.mxu0 %v606
    %1569 = vmatpush.bf16.msra.mxu0 %v602
    %1570 = vmatpush.bf16.msra.mxu0 %v598
    %1571 = vmatpush.bf16.msra.mxu0 %v594
    %1572 = vmatpush.bf16.msra.mxu0 %v590
    %1573 = vmatmul.bf16.gmra.mxu0 %v1564
    %v1574 = vpop.f32.mrf.mxu0
    %v1575 = vadd.f32 0.0, %v1574
    %v1576 = vpop.f32.mrf.mxu0
    %1577 = vdwg.mxu0
    %1578 = vmatpush.bf16.msra.mxu0 %v619
    %1579 = vmatpush.bf16.msra.mxu0 %v615
    %1580 = vmatpush.bf16.msra.mxu0 %v611
    %1581 = vmatpush.bf16.msra.mxu0 %v607
    %1582 = vmatpush.bf16.msra.mxu0 %v603
    %1583 = vmatpush.bf16.msra.mxu0 %v599
    %1584 = vmatpush.bf16.msra.mxu0 %v595
    %1585 = vmatpush.bf16.msra.mxu0 %v591
    %1586 = vmatmul.bf16.gmra.mxu0 %v1564
    %v1587 = vpop.f32.mrf.mxu0
    %v1588 = vadd.f32 0.0, %v1587
    %v1589 = vpop.f32.mrf.mxu0
    %1590 = vdwg.mxu0
    %1591 = vmatpush.bf16.msra.mxu0 %v620
    %1592 = vmatpush.bf16.msra.mxu0 %v616
    %1593 = vmatpush.bf16.msra.mxu0 %v612
    %1594 = vmatpush.bf16.msra.mxu0 %v608
    %1595 = vmatpush.bf16.msra.mxu0 %v604
    %1596 = vmatpush.bf16.msra.mxu0 %v600
    %1597 = vmatpush.bf16.msra.mxu0 %v596
    %1598 = vmatpush.bf16.msra.mxu0 %v592
    %1599 = vmatmul.bf16.gmra.mxu0 %v1564
    %v1600 = vpop.f32.mrf.mxu0
    %v1601 = vadd.f32 0.0, %v1600
    %v1602 = vpop.f32.mrf.mxu0
    %1603 = vdwg.mxu0
    %1604 = vmatpush.bf16.msra.mxu0 %v621
    %1605 = vmatpush.bf16.msra.mxu0 %v617
    %1606 = vmatpush.bf16.msra.mxu0 %v613
    %1607 = vmatpush.bf16.msra.mxu0 %v609
    %1608 = vmatpush.bf16.msra.mxu0 %v605
    %1609 = vmatpush.bf16.msra.mxu0 %v601
    %1610 = vmatpush.bf16.msra.mxu0 %v597
    %1611 = vmatpush.bf16.msra.mxu0 %v593
    %1612 = vmatmul.bf16.gmra.mxu0 %v1564
    %v1613 = vpop.f32.mrf.mxu0
    %v1614 = vadd.f32 0.0, %v1613
    %v1615 = vpop.f32.mrf.mxu0
    %1616 = vdwg.mxu0
    %v1617 = vadd.f32 %v1560, %v1575
    %v1618 = vadd.f32 %v1561, %v1588
    %v1619 = vadd.f32 %v1562, %v1601
    %v1620 = vadd.f32 %v1563, %v1614
    %v1621 = vxor.u32 %v1617, 2147483648
    %v1622 = vxor.u32 %v1618, 2147483648
    %v1623 = vxor.u32 %v1619, 2147483648
    %v1624 = vmul.f32 %v1621, 1.442695
    %v1625 = vpow.pop %v1624
    %v1626 = vmul.f32 %v1622, 1.442695
    %v1627 = vpow.pop %v1626
    %v1628 = vmul.f32 %v1623, 1.442695
    %v1629 = vpow.pop %v1628
    %v1630 = vadd.f32 %v1625, 1.0
    %v1631 = vadd.f32 %v1627, 1.0
    %v1632 = vadd.f32 %v1629, 1.0
    %v1633 = vrcp.pop %v1630
    %v1634 = vmul.f32 %v1630, %v1633
    %v1635 = vsub.f32 1.0, %v1634
    %v1636 = vmul.f32 %v1633, %v1635
    %v1637 = vadd.f32 %v1633, %v1636
    %vm1638 = vweird.f32 %v1630
    %vm1639 = vweird.f32 %v1633
    %vm1640 = vmor %vm1638, %vm1639
    %v1641 = vsel %vm1640, %v1633, %v1637
    %v1642 = vand.u32 2147483647, %v1630
    %vm1643 = vcmp.eq.f32.partialorder %v1642, 8.507059e+37
    %v1644 = vand.u32 %v1630, 2147483648
    %v1645 = vor.u32 1.1754944e-38, %v1644
    %v1646 = vsel %vm1643, %v1645, %v1641
    %v1647 = vmul.f32 1.0, %v1646
    %v1648 = vrcp.pop %v1631
    %v1649 = vmul.f32 %v1631, %v1648
    %v1650 = vsub.f32 1.0, %v1649
    %v1651 = vmul.f32 %v1648, %v1650
    %v1652 = vadd.f32 %v1648, %v1651
    %vm1653 = vweird.f32 %v1631
    %vm1654 = vweird.f32 %v1648
    %vm1655 = vmor %vm1653, %vm1654
    %v1656 = vsel %vm1655, %v1648, %v1652
    %v1657 = vand.u32 2147483647, %v1631
    %vm1658 = vcmp.eq.f32.partialorder %v1657, 8.507059e+37
    %v1659 = vand.u32 %v1631, 2147483648
    %v1660 = vor.u32 1.1754944e-38, %v1659
    %v1661 = vsel %vm1658, %v1660, %v1656
    %v1662 = vmul.f32 1.0, %v1661
    %v1663 = vrcp.pop %v1632
    %v1664 = vmul.f32 %v1632, %v1663
    %v1665 = vsub.f32 1.0, %v1664
    %v1666 = vmul.f32 %v1663, %v1665
    %v1667 = vadd.f32 %v1663, %v1666
    %vm1668 = vweird.f32 %v1632
    %vm1669 = vweird.f32 %v1663
    %vm1670 = vmor %vm1668, %vm1669
    %v1671 = vsel %vm1670, %v1663, %v1667
    %v1672 = vand.u32 2147483647, %v1632
    %vm1673 = vcmp.eq.f32.partialorder %v1672, 8.507059e+37
    %v1674 = vand.u32 %v1632, 2147483648
    %v1675 = vor.u32 1.1754944e-38, %v1674
    %v1676 = vsel %vm1673, %v1675, %v1671
    %v1677 = vmul.f32 1.0, %v1676
    %v1678 = vtanh.pop %v1620
    %v1679 = vmul.f32 %v1662, %v1559
    %v1680 = vmul.f32 %v1647, %v1678
    %v1681 = vadd.f32 %v1679, %v1680
    %v1682 = vtanh.pop %v1681
    %v1683 = vmul.f32 %v1677, %v1682
    %1684 = vset.pattern.permute.xlu0 7
    %1685 = vperm.xlu0 %1684, %v773
    %v1686 = vpop.permute.xlu0 %1685
    %vm1687 = vcmp.eq.s32.totalorder %v1686, 1
    %v1688 = vsel %vm1687, %v1683, %v1558
    %1689 = vst [vmem:[#allocation9] sm:$0xff] %v1688
    // Predicated region
    $region34: #{tpu_custom_call.1} parent=1 // pred_check
      _
    $region35: #{tpu_custom_call.1} parent=1 // pred_check_branch
      %1691 = sbr.rel (0) target = $region37
    $region36: #{tpu_custom_call.1} parent=1 // pred_region
      %1693 = vsyncadd [#allocation5], 0
      %s1695 = sshll.u32 [#allocation9], 4
      %s1696 = int_to_ptr.vmem [resolvable:$true] %s1695
      %s1697 = sshll.u32 %s5, 4
      %s1698 = int_to_ptr.hbm [resolvable:$true] %s1697
      %1700 = dma.vmem_to_hbm [thread:$0]  %s1696, 128, %s1698, [#allocation5]
    $region37: #{tpu_custom_call.1} parent=1 // pred_fallthru
      _
    // Predicated region
    $region38: #{tpu_custom_call.1} parent=1 // pred_check
      _
    $region39: #{tpu_custom_call.1} parent=1 // pred_check_branch
      %1702 = sbr.rel (0) target = $region41
    $region40: #{tpu_custom_call.1} parent=1 // pred_region
      %1704 = dma.done [#allocation5], 128
    $region41: #{tpu_custom_call.1} parent=1 // pred_fallthru
      _
    %1705 = vsyncpa [#allocation4], 1
    %1706 = vsyncpa [#allocation7], 1
    %1707 = vsyncpa [#allocation5], 1

</llo_original>
